<compile_context>
chip_gen: v7x
topology: tpu7x:2x2x1
jax: 0.10.0
libtpu: 0.0.40
codegen_flags: <defaults>
</compile_context>

<pallas_src>
import functools
import math

import jax
import jax.numpy as jnp
from jax.experimental import pallas as pl
from jax.experimental.pallas import tpu as pltpu


# --------------------------------------------------------------------------- #
# Kernel
# --------------------------------------------------------------------------- #
def _window_attention_kernel(x_ref, wqkv_ref, bqkv_ref, wproj_ref, bproj_ref,
                             o_ref, ctx_ref, *, num_heads, head_dim, n_valid,
                             compute_dtype):
    TB, Np, Cp = x_ref.shape          # padded tile: Np % 8 == 0, Cp % 128 == 0
    H = num_heads
    hd = head_dim                      # padded per-head width, H * hd == Cp
    cd = compute_dtype
    rows = TB * Np

    # ---- fused qkv projection: one (rows, Cp) x (Cp, 3Cp) MXU matmul --------
    # Weights arrive already in compute dtype (cast once in the wrapper); only
    # the activation tile is cast per step.  f32 accumulation, f32 bias add.
    x2 = x_ref[...].reshape(rows, Cp).astype(cd)
    qkv = jnp.dot(x2, wqkv_ref[...],
                  preferred_element_type=jnp.float32) + bqkv_ref[...]

    # ---- per-head attention (H is small & static: unrolled Python loop) -----
    # scale is pre-folded into Wq/bq; head bands are contiguous (head-major
    # padded weight layout built in the wrapper).
    for h in range(H):
        q = qkv[:, h * hd:(h + 1) * hd].astype(cd).reshape(TB, Np, hd)
        k = qkv[:, Cp + h * hd:Cp + (h + 1) * hd].astype(cd).reshape(TB, Np, hd)
        v = qkv[:, 2 * Cp + h * hd:
                   2 * Cp + (h + 1) * hd].astype(cd).reshape(TB, Np, hd)

        s = jnp.einsum('bqd,bkd->bqk', q, k,
                       preferred_element_type=jnp.float32)
        if Np != n_valid:
            # Padded key tokens pick up the qkv bias -> mask them out.
            kid = jax.lax.broadcasted_iota(jnp.int32, (1, 1, Np), 2)
            s = jnp.where(kid < n_valid, s, -1e30)

        # numerically-stable softmax over keys, kept in f32 (exp on EUP)
        s = s - jnp.max(s, axis=-1, keepdims=True)
        p = jnp.exp(s)
        inv = pl.reciprocal(jnp.sum(p, axis=-1, keepdims=True), approx=True)
        p = p * inv

        oh = jnp.einsum('bqk,bkd->bqd', p.astype(cd), v,
                        preferred_element_type=jnp.float32)
        # Write the head band straight into the VMEM ctx scratch in compute
        # dtype (matches torch's transpose(1, 2).flatten(start_dim=2) layout).
        ctx_ref[:, h * hd:(h + 1) * hd] = oh.reshape(rows, hd).astype(cd)

    # ---- output projection ---------------------------------------------------
    y = jnp.dot(ctx_ref[...], wproj_ref[...],
                preferred_element_type=jnp.float32) + bproj_ref[...]
    o_ref[...] = y.reshape(TB, Np, Cp).astype(o_ref.dtype)


# --------------------------------------------------------------------------- #
# VMEM budgeting helpers
# --------------------------------------------------------------------------- #
def _physical_vmem_bytes():
    try:
        return int(pltpu.get_tpu_info().vmem_capacity_bytes)
    except Exception:
        return 128 * 1024 * 1024   # v5e/v6e default; conservative elsewhere


def _vmem_estimate_bytes(block_b, Np, Cp, x_itemsize, w_itemsize, c_itemsize):
    rows = block_b * Np
    io_tiles = 2 * 2 * rows * Cp * x_itemsize          # x + out, double-buffered
    # Weight blocks have constant index_maps (fetched once); counted as
    # double-buffered to stay conservative (see TODO above).
    weights = 2 * ((Cp * 3 * Cp + Cp * Cp) * w_itemsize + 4 * Cp * 4)
    ctx = rows * Cp * c_itemsize                        # VMEM scratch
    # f32 intermediates: qkv slab, per-head logits+probs, head out, proj acc
    interm = (rows * 3 * Cp + 2 * block_b * Np * Np + 2 * rows * Cp) * 4
    return io_tiles + weights + ctx + 2 * interm


# --------------------------------------------------------------------------- #
# Parameter padding / repacking (done once, outside the kernel)
# --------------------------------------------------------------------------- #
def _pad_params(w_qkv, b_qkv, w_proj, b_proj, *, C, H, hd, hdp, Cp, scale,
                param_dtype):
    """Pad to (Cp, 3Cp)/(Cp, Cp) head-major layout, fold scale into Wq/bq."""
    wq = w_qkv[:, :C] * scale
    wk = w_qkv[:, C:2 * C]
    wv = w_qkv[:, 2 * C:]
    bq = b_qkv[:C] * scale
    bk = b_qkv[C:2 * C]
    bv = b_qkv[2 * C:]

    def pad_cols(w):                       # (C, C) -> (Cp, Cp), head-major cols
        out = jnp.zeros((Cp, Cp), param_dtype)
        for h in range(H):
            out = out.at[:C, h * hdp:h * hdp + hd].set(
                w[:, h * hd:(h + 1) * hd].astype(param_dtype))
        return out

    def pad_vec(b):                        # (C,) -> (Cp,), head-major, f32
        out = jnp.zeros((Cp,), jnp.float32)
        for h in range(H):
            out = out.at[h * hdp:h * hdp + hd].set(
                b[h * hd:(h + 1) * hd].astype(jnp.float32))
        return out

    w_qkv_p = jnp.concatenate([pad_cols(wq), pad_cols(wk), pad_cols(wv)],
                              axis=1)                       # (Cp, 3Cp)
    b_qkv_p = jnp.concatenate([pad_vec(bq), pad_vec(bk), pad_vec(bv)]
                              ).reshape(1, 3 * Cp)          # f32

    w_proj_p = jnp.zeros((Cp, Cp), param_dtype)
    for h in range(H):
        w_proj_p = w_proj_p.at[h * hdp:h * hdp + hd, :C].set(
            w_proj[h * hd:(h + 1) * hd, :].astype(param_dtype))
    b_proj_p = jnp.zeros((Cp,), jnp.float32).at[:C].set(
        b_proj.astype(jnp.float32)).reshape(1, Cp)
    return w_qkv_p, b_qkv_p, w_proj_p, b_proj_p


# --------------------------------------------------------------------------- #
# Wrapper
# --------------------------------------------------------------------------- #
def window_attention_forward(x, w_qkv, b_qkv, w_proj, b_proj, *, num_heads,
                             block_b=None, compute_dtype=jnp.bfloat16):
    """WindowAttention forward, mask=None path.  x: (B, N, C) -> (B, N, C)."""
    B, N, C = x.shape
    H = num_heads
    assert C % H == 0
    hd = C // H
    scale = hd ** (-0.5)
    cd = jnp.dtype(compute_dtype)

    # Padded geometry: Np % 8 == 0; per-head band hdp >= hd with
    # hdp % 8 == 0 and (H * hdp) % 128 == 0  ->  Cp = H * hdp is lane-dense.
    Np = ((N + 7) // 8) * 8
    hdp = hd
    while (H * hdp) % 128 or hdp % 8:
        hdp += 1
    Cp = H * hdp

    # One-time parameter repack (pad + head-major permute + scale fold + cast).
    # In production this would be done once at load time, not per call.
    w_qkv_p, b_qkv_p, w_proj_p, b_proj_p = _pad_params(
        w_qkv, b_qkv, w_proj, b_proj, C=C, H=H, hd=hd, hdp=hdp, Cp=Cp,
        scale=scale, param_dtype=cd)

    if Np != N or Cp != C:
        x_p = jnp.pad(x, ((0, 0), (0, Np - N), (0, Cp - C)))
    else:
        x_p = x

    # --- tile sizing -----------------------------------------------------------
    x_item = x.dtype.itemsize
    w_item = cd.itemsize
    if block_b is None:
        block_b = max(1, min(B, 1024 // max(Np, 1)))   # ~1024 token rows / tile
    block_b = max(1, min(block_b, B))
    while B % block_b:                                  # avoid ragged tail tiles
        block_b -= 1
    phys = _physical_vmem_bytes()
    cap = (phys * 3) // 4
    while block_b > 1 and _vmem_estimate_bytes(
            block_b, Np, Cp, x_item, w_item, w_item) > cap:
        block_b -= 1
        while block_b > 1 and B % block_b:
            block_b -= 1

    est = _vmem_estimate_bytes(block_b, Np, Cp, x_item, w_item, w_item)
    vmem_limit = int(min(max(est, 16 * 1024 * 1024), cap))

    kernel = functools.partial(
        _window_attention_kernel,
        num_heads=H, head_dim=hdp, n_valid=N, compute_dtype=cd)

    grid = (pl.cdiv(B, block_b),)
    out = pl.pallas_call(
        kernel,
        out_shape=jax.ShapeDtypeStruct((B, Np, Cp), x.dtype),
        grid=grid,
        in_specs=[
            pl.BlockSpec((block_b, Np, Cp), lambda i: (i, 0, 0)),
            pl.BlockSpec((Cp, 3 * Cp), lambda i: (0, 0)),
            pl.BlockSpec((1, 3 * Cp), lambda i: (0, 0)),
            pl.BlockSpec((Cp, Cp), lambda i: (0, 0)),
            pl.BlockSpec((1, Cp), lambda i: (0, 0)),
        ],
        out_specs=pl.BlockSpec((block_b, Np, Cp), lambda i: (i, 0, 0)),
        scratch_shapes=[pltpu.VMEM((block_b * Np, Cp), cd)],
        compiler_params=pltpu.CompilerParams(
            # independent windows -> grid steps shard across TCs (v7x megacore)
            dimension_semantics=("parallel",),
            vmem_limit_bytes=vmem_limit,
        ),
    )(x_p, w_qkv_p, b_qkv_p, w_proj_p, b_proj_p)

    if Np != N or Cp != C:
        out = out[:, :N, :C]
    return out


# --------------------------------------------------------------------------- #
# Pure-JAX reference (mirror of the PyTorch module, mask=None)
# --------------------------------------------------------------------------- #
def reference_window_attention(x, w_qkv, b_qkv, w_proj, b_proj, num_heads):
    B, N, C = x.shape
    H = num_heads
    hd = C // H
    hi = jax.lax.Precision.HIGHEST
    qkv = jnp.einsum('bnc,cd->bnd', x, w_qkv, precision=hi) + b_qkv
    q, k, v = jnp.split(qkv, 3, axis=-1)

    def to_heads(a):
        return a.reshape(B, N, H, hd).transpose(0, 2, 1, 3)   # (B, H, N, hd)

    q, k, v = to_heads(q), to_heads(k), to_heads(v)
    attn = jnp.einsum('bhqd,bhkd->bhqk', q, k, precision=hi) * (hd ** -0.5)
    attn = jax.nn.softmax(attn, axis=-1)
    out = jnp.einsum('bhqk,bhkd->bhqd', attn, v, precision=hi)
    out = out.transpose(0, 2, 1, 3).reshape(B, N, C)
    return jnp.einsum('bnc,cd->bnd', out, w_proj, precision=hi) + b_proj


if __name__ == "__main__":
    # Small shapes consistent with the module: 2 windows, 8 tokens per window,
    # emb_dim=32, 4 heads (head_dim=8).  Padded internally to N=8, C=128.
    B, N, emb_dim, num_heads = 2, 8, 32, 4

    key = jax.random.PRNGKey(0)
    kx, kw1, kb1, kw2, kb2 = jax.random.split(key, 5)

    x = jax.random.normal(kx, (B, N, emb_dim), dtype=jnp.float32)

    # Deterministic parameter init (Kaiming-uniform-ish bounds like nn.Linear).
    bound = 1.0 / math.sqrt(emb_dim)
    w_qkv = jax.random.uniform(kw1, (emb_dim, 3 * emb_dim), jnp.float32,
                               -bound, bound)
    b_qkv = jax.random.uniform(kb1, (3 * emb_dim,), jnp.float32, -bound, bound)
    w_proj = jax.random.uniform(kw2, (emb_dim, emb_dim), jnp.float32,
                                -bound, bound)
    b_proj = jax.random.uniform(kb2, (emb_dim,), jnp.float32, -bound, bound)

    ref = reference_window_attention(x, w_qkv, b_qkv, w_proj, b_proj, num_heads)

    # f32-operand path (block_b=1 -> grid=(2,): exercises the tiled, pipelined,
    # parallel grid + padding + scratch-ctx paths with tight tolerance).
    out_f32 = jax.block_until_ready(
        window_attention_forward(x, w_qkv, b_qkv, w_proj, b_proj,
                                 num_heads=num_heads, block_b=1,
                                 compute_dtype=jnp.float32))
    assert out_f32.shape == (B, N, emb_dim)
    assert jnp.allclose(out_f32, ref, atol=2e-2, rtol=2e-2), \
        "f32 mismatch vs reference"

    # Default path: bf16 MXU operands (f32 accumulation, f32 softmax),
    # bf16 weights pre-cast in the wrapper; loose tolerance.
    out_bf16 = jax.block_until_ready(
        window_attention_forward(x, w_qkv, b_qkv, w_proj, b_proj,
                                 num_heads=num_heads))
    assert out_bf16.shape == (B, N, emb_dim)
    assert jnp.allclose(out_bf16, ref, atol=1e-1, rtol=1e-1), \
        "bf16 mismatch vs reference"

    print("KERNEL_OK")
</pallas_src>

<mosaic_0001>
module attributes {stable_mosaic.version = 11 : i64} {
  func.func @_window_attention_kernel(%arg0: i32, %arg1: memref<1x8x128xf32, #tpu.memory_space<vmem>>, %arg2: memref<128x384xf32, #tpu.memory_space<vmem>>, %arg3: memref<1x384xf32, #tpu.memory_space<vmem>>, %arg4: memref<128x128xf32, #tpu.memory_space<vmem>>, %arg5: memref<1x128xf32, #tpu.memory_space<vmem>>, %arg6: memref<1x8x128xf32, #tpu.memory_space<vmem>>, %arg7: memref<8x128xf32, #tpu.memory_space<vmem>>) attributes {dimension_semantics = [#tpu.dimension_semantics<parallel>], iteration_bounds = array<i64: 2>, scalar_prefetch = 0 : i64, scratch_operands = 1 : i64, tpu.core_type = #tpu.core_type<tc>, window_params = [{transform_indices = @transform_0, window_bounds = array<i64: 1, 8, 128>}, {pipeline_mode = #tpu.pipeline_mode<synchronous>, transform_indices = @transform_1, window_bounds = array<i64: 128, 384>}, {pipeline_mode = #tpu.pipeline_mode<synchronous>, transform_indices = @transform_2, window_bounds = array<i64: 1, 384>}, {pipeline_mode = #tpu.pipeline_mode<synchronous>, transform_indices = @transform_3, window_bounds = array<i64: 128, 128>}, {pipeline_mode = #tpu.pipeline_mode<synchronous>, transform_indices = @transform_4, window_bounds = array<i64: 1, 128>}, {transform_indices = @transform_5, window_bounds = array<i64: 1, 8, 128>}]} {
    %c0 = arith.constant 0 : index
    %c0_0 = arith.constant 0 : index
    %c0_1 = arith.constant 0 : index
    %0 = vector.load %arg1[%c0, %c0_0, %c0_1] : memref<1x8x128xf32, #tpu.memory_space<vmem>>, vector<1x8x128xf32>
    %1 = vector.shape_cast %0 : vector<1x8x128xf32> to vector<8x128xf32>
    %c0_2 = arith.constant 0 : index
    %c0_3 = arith.constant 0 : index
    %2 = vector.load %arg2[%c0_2, %c0_3] : memref<128x384xf32, #tpu.memory_space<vmem>>, vector<128x384xf32>
    %cst = arith.constant dense<0.000000e+00> : vector<8x384xf32>
    %3 = tpu.matmul %1, %2, %cst {dimension_numbers = #tpu.dot_dimension_numbers<[1], [0], [0], [1], [0, 0, 1, 1], [], []>} : vector<8x128xf32>, vector<128x384xf32>, vector<8x384xf32> -> vector<8x384xf32>
    %c0_4 = arith.constant 0 : index
    %c0_5 = arith.constant 0 : index
    %4 = vector.load %arg3[%c0_4, %c0_5] : memref<1x384xf32, #tpu.memory_space<vmem>>, vector<1x384xf32>
    %5 = vector.broadcast %4 : vector<1x384xf32> to vector<8x384xf32>
    %6 = arith.addf %3, %5 : vector<8x384xf32>
    %7 = vector.extract_strided_slice %6 {offsets = [0, 0], sizes = [8, 32], strides = [1, 1]} : vector<8x384xf32> to vector<8x32xf32>
    %8 = vector.shape_cast %7 : vector<8x32xf32> to vector<1x8x32xf32>
    %9 = vector.extract_strided_slice %6 {offsets = [0, 128], sizes = [8, 32], strides = [1, 1]} : vector<8x384xf32> to vector<8x32xf32>
    %10 = vector.shape_cast %9 : vector<8x32xf32> to vector<1x8x32xf32>
    %11 = vector.extract_strided_slice %6 {offsets = [0, 256], sizes = [8, 32], strides = [1, 1]} : vector<8x384xf32> to vector<8x32xf32>
    %12 = vector.shape_cast %11 : vector<8x32xf32> to vector<1x8x32xf32>
    "tpu.trace_start"() <{level = 10 : i32, message = "bqd,bkd->bqk"}> : () -> ()
    %cst_6 = arith.constant dense<0.000000e+00> : vector<1x8x8xf32>
    %13 = tpu.matmul %8, %10, %cst_6 {dimension_numbers = #tpu.dot_dimension_numbers<[2], [2], [1], [1], [0, 0, 0, 1, 1, 1], [0], [0]>} : vector<1x8x32xf32>, vector<1x8x32xf32>, vector<1x8x8xf32> -> vector<1x8x8xf32>
    "tpu.trace_stop"() : () -> ()
    %cst_7 = arith.constant dense<0xFF800000> : vector<1x8xf32>
    %14 = vector.multi_reduction <maximumf>, %13, %cst_7 [2] : vector<1x8x8xf32> to vector<1x8xf32>
    %15 = vector.shape_cast %14 : vector<1x8xf32> to vector<1x8x1xf32>
    %16 = vector.broadcast %15 : vector<1x8x1xf32> to vector<1x8x8xf32>
    %17 = arith.subf %13, %16 : vector<1x8x8xf32>
    %18 = math.exp %17 : vector<1x8x8xf32>
    %cst_8 = arith.constant dense<0.000000e+00> : vector<1x8xf32>
    %19 = vector.multi_reduction <add>, %18, %cst_8 [2] : vector<1x8x8xf32> to vector<1x8xf32>
    %20 = vector.shape_cast %19 : vector<1x8xf32> to vector<1x8x1xf32>
    %21 = tpu.reciprocal %20 {approx = true} : vector<1x8x1xf32> -> vector<1x8x1xf32>
    %22 = vector.broadcast %21 : vector<1x8x1xf32> to vector<1x8x8xf32>
    %23 = arith.mulf %18, %22 : vector<1x8x8xf32>
    "tpu.trace_start"() <{level = 10 : i32, message = "bqk,bkd->bqd"}> : () -> ()
    %cst_9 = arith.constant dense<0.000000e+00> : vector<1x8x32xf32>
    %24 = tpu.matmul %23, %12, %cst_9 {dimension_numbers = #tpu.dot_dimension_numbers<[2], [1], [1], [2], [0, 0, 0, 1, 1, 2], [0], [0]>} : vector<1x8x8xf32>, vector<1x8x32xf32>, vector<1x8x32xf32> -> vector<1x8x32xf32>
    "tpu.trace_stop"() : () -> ()
    %25 = vector.shape_cast %24 : vector<1x8x32xf32> to vector<8x32xf32>
    %c0_10 = arith.constant 0 : index
    %c0_11 = arith.constant 0 : index
    %26 = vector.load %arg7[%c0_10, %c0_11] : memref<8x128xf32, #tpu.memory_space<vmem>>, vector<8x32xf32>
    tpu.vector_store %arg7[%c0_10, %c0_11], %25 {strides = array<i32>} : memref<8x128xf32, #tpu.memory_space<vmem>>, vector<8x32xf32>,
    %27 = vector.extract_strided_slice %6 {offsets = [0, 32], sizes = [8, 32], strides = [1, 1]} : vector<8x384xf32> to vector<8x32xf32>
    %28 = vector.shape_cast %27 : vector<8x32xf32> to vector<1x8x32xf32>
    %29 = vector.extract_strided_slice %6 {offsets = [0, 160], sizes = [8, 32], strides = [1, 1]} : vector<8x384xf32> to vector<8x32xf32>
    %30 = vector.shape_cast %29 : vector<8x32xf32> to vector<1x8x32xf32>
    %31 = vector.extract_strided_slice %6 {offsets = [0, 288], sizes = [8, 32], strides = [1, 1]} : vector<8x384xf32> to vector<8x32xf32>
    %32 = vector.shape_cast %31 : vector<8x32xf32> to vector<1x8x32xf32>
    "tpu.trace_start"() <{level = 10 : i32, message = "bqd,bkd->bqk"}> : () -> ()
    %cst_12 = arith.constant dense<0.000000e+00> : vector<1x8x8xf32>
    %33 = tpu.matmul %28, %30, %cst_12 {dimension_numbers = #tpu.dot_dimension_numbers<[2], [2], [1], [1], [0, 0, 0, 1, 1, 1], [0], [0]>} : vector<1x8x32xf32>, vector<1x8x32xf32>, vector<1x8x8xf32> -> vector<1x8x8xf32>
    "tpu.trace_stop"() : () -> ()
    %cst_13 = arith.constant dense<0xFF800000> : vector<1x8xf32>
    %34 = vector.multi_reduction <maximumf>, %33, %cst_13 [2] : vector<1x8x8xf32> to vector<1x8xf32>
    %35 = vector.shape_cast %34 : vector<1x8xf32> to vector<1x8x1xf32>
    %36 = vector.broadcast %35 : vector<1x8x1xf32> to vector<1x8x8xf32>
    %37 = arith.subf %33, %36 : vector<1x8x8xf32>
    %38 = math.exp %37 : vector<1x8x8xf32>
    %cst_14 = arith.constant dense<0.000000e+00> : vector<1x8xf32>
    %39 = vector.multi_reduction <add>, %38, %cst_14 [2] : vector<1x8x8xf32> to vector<1x8xf32>
    %40 = vector.shape_cast %39 : vector<1x8xf32> to vector<1x8x1xf32>
    %41 = tpu.reciprocal %40 {approx = true} : vector<1x8x1xf32> -> vector<1x8x1xf32>
    %42 = vector.broadcast %41 : vector<1x8x1xf32> to vector<1x8x8xf32>
    %43 = arith.mulf %38, %42 : vector<1x8x8xf32>
    "tpu.trace_start"() <{level = 10 : i32, message = "bqk,bkd->bqd"}> : () -> ()
    %cst_15 = arith.constant dense<0.000000e+00> : vector<1x8x32xf32>
    %44 = tpu.matmul %43, %32, %cst_15 {dimension_numbers = #tpu.dot_dimension_numbers<[2], [1], [1], [2], [0, 0, 0, 1, 1, 2], [0], [0]>} : vector<1x8x8xf32>, vector<1x8x32xf32>, vector<1x8x32xf32> -> vector<1x8x32xf32>
    "tpu.trace_stop"() : () -> ()
    %45 = vector.shape_cast %44 : vector<1x8x32xf32> to vector<8x32xf32>
    %c0_16 = arith.constant 0 : index
    %c32 = arith.constant 32 : index
    %46 = vector.load %arg7[%c0_16, %c32] : memref<8x128xf32, #tpu.memory_space<vmem>>, vector<8x32xf32>
    tpu.vector_store %arg7[%c0_16, %c32], %45 {strides = array<i32>} : memref<8x128xf32, #tpu.memory_space<vmem>>, vector<8x32xf32>,
    %47 = vector.extract_strided_slice %6 {offsets = [0, 64], sizes = [8, 32], strides = [1, 1]} : vector<8x384xf32> to vector<8x32xf32>
    %48 = vector.shape_cast %47 : vector<8x32xf32> to vector<1x8x32xf32>
    %49 = vector.extract_strided_slice %6 {offsets = [0, 192], sizes = [8, 32], strides = [1, 1]} : vector<8x384xf32> to vector<8x32xf32>
    %50 = vector.shape_cast %49 : vector<8x32xf32> to vector<1x8x32xf32>
    %51 = vector.extract_strided_slice %6 {offsets = [0, 320], sizes = [8, 32], strides = [1, 1]} : vector<8x384xf32> to vector<8x32xf32>
    %52 = vector.shape_cast %51 : vector<8x32xf32> to vector<1x8x32xf32>
    "tpu.trace_start"() <{level = 10 : i32, message = "bqd,bkd->bqk"}> : () -> ()
    %cst_17 = arith.constant dense<0.000000e+00> : vector<1x8x8xf32>
    %53 = tpu.matmul %48, %50, %cst_17 {dimension_numbers = #tpu.dot_dimension_numbers<[2], [2], [1], [1], [0, 0, 0, 1, 1, 1], [0], [0]>} : vector<1x8x32xf32>, vector<1x8x32xf32>, vector<1x8x8xf32> -> vector<1x8x8xf32>
    "tpu.trace_stop"() : () -> ()
    %cst_18 = arith.constant dense<0xFF800000> : vector<1x8xf32>
    %54 = vector.multi_reduction <maximumf>, %53, %cst_18 [2] : vector<1x8x8xf32> to vector<1x8xf32>
    %55 = vector.shape_cast %54 : vector<1x8xf32> to vector<1x8x1xf32>
    %56 = vector.broadcast %55 : vector<1x8x1xf32> to vector<1x8x8xf32>
    %57 = arith.subf %53, %56 : vector<1x8x8xf32>
    %58 = math.exp %57 : vector<1x8x8xf32>
    %cst_19 = arith.constant dense<0.000000e+00> : vector<1x8xf32>
    %59 = vector.multi_reduction <add>, %58, %cst_19 [2] : vector<1x8x8xf32> to vector<1x8xf32>
    %60 = vector.shape_cast %59 : vector<1x8xf32> to vector<1x8x1xf32>
    %61 = tpu.reciprocal %60 {approx = true} : vector<1x8x1xf32> -> vector<1x8x1xf32>
    %62 = vector.broadcast %61 : vector<1x8x1xf32> to vector<1x8x8xf32>
    %63 = arith.mulf %58, %62 : vector<1x8x8xf32>
    "tpu.trace_start"() <{level = 10 : i32, message = "bqk,bkd->bqd"}> : () -> ()
    %cst_20 = arith.constant dense<0.000000e+00> : vector<1x8x32xf32>
    %64 = tpu.matmul %63, %52, %cst_20 {dimension_numbers = #tpu.dot_dimension_numbers<[2], [1], [1], [2], [0, 0, 0, 1, 1, 2], [0], [0]>} : vector<1x8x8xf32>, vector<1x8x32xf32>, vector<1x8x32xf32> -> vector<1x8x32xf32>
    "tpu.trace_stop"() : () -> ()
    %65 = vector.shape_cast %64 : vector<1x8x32xf32> to vector<8x32xf32>
    %c0_21 = arith.constant 0 : index
    %c64 = arith.constant 64 : index
    %66 = vector.load %arg7[%c0_21, %c64] : memref<8x128xf32, #tpu.memory_space<vmem>>, vector<8x32xf32>
    tpu.vector_store %arg7[%c0_21, %c64], %65 {strides = array<i32>} : memref<8x128xf32, #tpu.memory_space<vmem>>, vector<8x32xf32>,
    %67 = vector.extract_strided_slice %6 {offsets = [0, 96], sizes = [8, 32], strides = [1, 1]} : vector<8x384xf32> to vector<8x32xf32>
    %68 = vector.shape_cast %67 : vector<8x32xf32> to vector<1x8x32xf32>
    %69 = vector.extract_strided_slice %6 {offsets = [0, 224], sizes = [8, 32], strides = [1, 1]} : vector<8x384xf32> to vector<8x32xf32>
    %70 = vector.shape_cast %69 : vector<8x32xf32> to vector<1x8x32xf32>
    %71 = vector.extract_strided_slice %6 {offsets = [0, 352], sizes = [8, 32], strides = [1, 1]} : vector<8x384xf32> to vector<8x32xf32>
    %72 = vector.shape_cast %71 : vector<8x32xf32> to vector<1x8x32xf32>
    "tpu.trace_start"() <{level = 10 : i32, message = "bqd,bkd->bqk"}> : () -> ()
    %cst_22 = arith.constant dense<0.000000e+00> : vector<1x8x8xf32>
    %73 = tpu.matmul %68, %70, %cst_22 {dimension_numbers = #tpu.dot_dimension_numbers<[2], [2], [1], [1], [0, 0, 0, 1, 1, 1], [0], [0]>} : vector<1x8x32xf32>, vector<1x8x32xf32>, vector<1x8x8xf32> -> vector<1x8x8xf32>
    "tpu.trace_stop"() : () -> ()
    %cst_23 = arith.constant dense<0xFF800000> : vector<1x8xf32>
    %74 = vector.multi_reduction <maximumf>, %73, %cst_23 [2] : vector<1x8x8xf32> to vector<1x8xf32>
    %75 = vector.shape_cast %74 : vector<1x8xf32> to vector<1x8x1xf32>
    %76 = vector.broadcast %75 : vector<1x8x1xf32> to vector<1x8x8xf32>
    %77 = arith.subf %73, %76 : vector<1x8x8xf32>
    %78 = math.exp %77 : vector<1x8x8xf32>
    %cst_24 = arith.constant dense<0.000000e+00> : vector<1x8xf32>
    %79 = vector.multi_reduction <add>, %78, %cst_24 [2] : vector<1x8x8xf32> to vector<1x8xf32>
    %80 = vector.shape_cast %79 : vector<1x8xf32> to vector<1x8x1xf32>
    %81 = tpu.reciprocal %80 {approx = true} : vector<1x8x1xf32> -> vector<1x8x1xf32>
    %82 = vector.broadcast %81 : vector<1x8x1xf32> to vector<1x8x8xf32>
    %83 = arith.mulf %78, %82 : vector<1x8x8xf32>
    "tpu.trace_start"() <{level = 10 : i32, message = "bqk,bkd->bqd"}> : () -> ()
    %cst_25 = arith.constant dense<0.000000e+00> : vector<1x8x32xf32>
    %84 = tpu.matmul %83, %72, %cst_25 {dimension_numbers = #tpu.dot_dimension_numbers<[2], [1], [1], [2], [0, 0, 0, 1, 1, 2], [0], [0]>} : vector<1x8x8xf32>, vector<1x8x32xf32>, vector<1x8x32xf32> -> vector<1x8x32xf32>
    "tpu.trace_stop"() : () -> ()
    %85 = vector.shape_cast %84 : vector<1x8x32xf32> to vector<8x32xf32>
    %c0_26 = arith.constant 0 : index
    %c96 = arith.constant 96 : index
    %86 = vector.load %arg7[%c0_26, %c96] : memref<8x128xf32, #tpu.memory_space<vmem>>, vector<8x32xf32>
    tpu.vector_store %arg7[%c0_26, %c96], %85 {strides = array<i32>} : memref<8x128xf32, #tpu.memory_space<vmem>>, vector<8x32xf32>,
    %c0_27 = arith.constant 0 : index
    %c0_28 = arith.constant 0 : index
    %87 = vector.load %arg7[%c0_27, %c0_28] : memref<8x128xf32, #tpu.memory_space<vmem>>, vector<8x128xf32>
    %c0_29 = arith.constant 0 : index
    %c0_30 = arith.constant 0 : index
    %88 = vector.load %arg4[%c0_29, %c0_30] : memref<128x128xf32, #tpu.memory_space<vmem>>, vector<128x128xf32>
    %cst_31 = arith.constant dense<0.000000e+00> : vector<8x128xf32>
    %89 = tpu.matmul %87, %88, %cst_31 {dimension_numbers = #tpu.dot_dimension_numbers<[1], [0], [0], [1], [0, 0, 1, 1], [], []>} : vector<8x128xf32>, vector<128x128xf32>, vector<8x128xf32> -> vector<8x128xf32>
    %c0_32 = arith.constant 0 : index
    %c0_33 = arith.constant 0 : index
    %90 = vector.load %arg5[%c0_32, %c0_33] : memref<1x128xf32, #tpu.memory_space<vmem>>, vector<1x128xf32>
    %91 = vector.broadcast %90 : vector<1x128xf32> to vector<8x128xf32>
    %92 = arith.addf %89, %91 : vector<8x128xf32>
    %93 = vector.shape_cast %92 : vector<8x128xf32> to vector<1x8x128xf32>
    %c0_34 = arith.constant 0 : index
    %c0_35 = arith.constant 0 : index
    %c0_36 = arith.constant 0 : index
    %94 = vector.load %arg6[%c0_34, %c0_35, %c0_36] : memref<1x8x128xf32, #tpu.memory_space<vmem>>, vector<1x8x128xf32>
    tpu.vector_store %arg6[%c0_34, %c0_35, %c0_36], %93 {strides = array<i32>} : memref<1x8x128xf32, #tpu.memory_space<vmem>>, vector<1x8x128xf32>,
    return
  }
  func.func @transform_0(%arg0: i32) -> (i32, i32, i32) {
    %c0_i32 = arith.constant 0 : i32
    %c0_i32_0 = arith.constant 0 : i32
    %c0_i32_1 = arith.constant 0 : i32
    return %arg0, %c0_i32, %c0_i32_0 : i32, i32, i32
  }
  func.func @transform_1(%arg0: i32) -> (i32, i32) {
    %c0_i32 = arith.constant 0 : i32
    %c0_i32_0 = arith.constant 0 : i32
    %c0_i32_1 = arith.constant 0 : i32
    return %c0_i32, %c0_i32_0 : i32, i32
  }
  func.func @transform_2(%arg0: i32) -> (i32, i32) {
    %c0_i32 = arith.constant 0 : i32
    %c0_i32_0 = arith.constant 0 : i32
    %c0_i32_1 = arith.constant 0 : i32
    return %c0_i32, %c0_i32_0 : i32, i32
  }
  func.func @transform_3(%arg0: i32) -> (i32, i32) {
    %c0_i32 = arith.constant 0 : i32
    %c0_i32_0 = arith.constant 0 : i32
    %c0_i32_1 = arith.constant 0 : i32
    return %c0_i32, %c0_i32_0 : i32, i32
  }
  func.func @transform_4(%arg0: i32) -> (i32, i32) {
    %c0_i32 = arith.constant 0 : i32
    %c0_i32_0 = arith.constant 0 : i32
    %c0_i32_1 = arith.constant 0 : i32
    return %c0_i32, %c0_i32_0 : i32, i32
  }
  func.func @transform_5(%arg0: i32) -> (i32, i32, i32) {
    %c0_i32 = arith.constant 0 : i32
    %c0_i32_0 = arith.constant 0 : i32
    %c0_i32_1 = arith.constant 0 : i32
    return %arg0, %c0_i32, %c0_i32_0 : i32, i32, i32
  }
}

</mosaic_0001>

<llo_original>
// kernel: tpu_custom_call.1
$region0: #{tpu_custom_call.1}
  #allocation0 [shape = 'u32[]', space=smem, size = 0x4, offset = 0x4, fixed_abs, tag = 'smem constant byte address 0x4 - core index']
  #allocation1 [shape = 'u32[144,128]{1,0:T(1,128)}', space=vmem, size = 0x12000, scoped, tag = 'internal scratch']
  #allocation2 [shape = 'f32[8,128]{1,0:T(8,128)}', space=vmem, size = 0x1000, scoped, tag = 'scratch operand']
  %s0 = inlined_call_operand.hbm [shape: f32[2,8,128], index: 0, kind: input, shape index: {}]
  %s1 = inlined_call_operand.hbm [shape: f32[128,384], index: 1, kind: input, shape index: {}]
  %s2 = inlined_call_operand.vmem [shape: f32[1,384], index: 2, kind: input, shape index: {}]
  %s3 = inlined_call_operand.hbm [shape: f32[128,128], index: 3, kind: input, shape index: {}]
  %s4 = inlined_call_operand.vmem [shape: f32[1,128], index: 4, kind: input, shape index: {}]
  %s5 = inlined_call_operand.hbm [shape: f32[2,8,128], index: 5, kind: output, shape index: {}]
  %s6 = sld [smem:[#allocation0]]
  $region65: #{tpu_custom_call.1} parent=0
    _
  %s8 = ssub.s32 1, %s6
  %s9 = scalar_select 0, %s8, %s6
  $region1: #{tpu_custom_call.1} parent=0
    #allocation3 [shape = 'u8[8192]{0}', space=vmem, size = 0x2000, scoped, tag = 'input window, operand 0']
    #allocation4 [shape = 's32[2]{0}', space=sflag, size = 0x8, scoped, tag = 'scoped memory for tpu_custom_call.1']
    #allocation5 [shape = 's32[2]{0}', space=sflag, size = 0x8, scoped, tag = 'scoped memory for tpu_custom_call.1']
    #allocation6 [shape = 'u8[196608]{0}', space=vmem, size = 0x30000, scoped, tag = 'input window, operand 1, single buffered']
    #allocation7 [shape = 's32[1]{0}', space=sflag, size = 0x4, scoped, tag = 'scoped memory for tpu_custom_call.1']
    #allocation8 [shape = 'u8[65536]{0}', space=vmem, size = 0x10000, scoped, tag = 'input window, operand 3, single buffered']
    #allocation9 [shape = 'u8[8192]{0}', space=vmem, size = 0x2000, scoped, tag = 'output window, operand 0']
    %10 = vsyncpa [#allocation4], 0
    %s11 = scalar_lea.sflag [#allocation4], 1
    %12 = vsyncpa %s11, 0
    %13 = vsyncpa [#allocation7], 0
    %14 = vsyncpa [#allocation5], 0
    %s15 = scalar_lea.sflag [#allocation5], 1
    %16 = vsyncpa %s15, 0
    loop: start=0, step=1, limit=4
    $region2: #{tpu_custom_call.1} parent=1 // loop_pre_header
      _
    $region3: #{tpu_custom_call.1} parent=1 // loop_header
      %s18 = sphi 0, %s22
      %p19 = scmp.ge.s32.totalorder %s18, 4
      %s28 = sphi 0, %s30
      %s31 = sphi 0, %s28
      %s32 = sphi 0, %s31
      %s48 = sphi 0, %s32
      %s52 = sphi 0, %s52
      %s54 = sphi 0, %s52
      %s55 = sphi 0, %s54
      %s69 = sphi 0, %s55
      %s73 = sphi 0, %s73
      %s75 = sphi 0, %s73
      %s76 = sphi 0, %s75
      %s90 = sphi 0, %s76
      %s94 = sphi 0, %s94
      %s96 = sphi 0, %s94
      %s97 = sphi 0, %s96
      %s111 = sphi 0, %s97
      %s115 = sphi 0, %s115
      %s117 = sphi 0, %s115
      %s118 = sphi 0, %s117
      %s132 = sphi 0, %s118
      %s138 = sphi 0, %s140
      %s141 = sphi 0, %s138
      %s142 = sphi 0, %s141
      %s158 = sphi 0, %s142
    $region4: #{tpu_custom_call.1} parent=1 // loop_header_branch
      %21 = sbr.rel (%p19) target = $region8
    $region5: #{tpu_custom_call.1} parent=1 // loop_body
      %s23 = ssub.s32 %s18, 1
      %s24 = ssub.s32 %s18, 2
      %s25 = sadd.s32 %s18, 1
      %s26 = ssub.s32 %s18, %s25
      %p27 = scmp.eq.s32.totalorder %s26, 0
      %s29 = sadd.s32 %s28, 1
      %s30 = scalar_select %p27, %s28, %s29
      %p33 = pneg %p27
      %p34 = scmp.eq.s32.totalorder %s18, 1
      %p35 = por %p33, %p34
      %p36 = scmp.ne.s32.totalorder %s28, %s31
      %p37 = scmp.eq.s32.totalorder %s18, 0
      %p38 = por %p36, %p37
      %p39 = scmp.ne.s32.totalorder %s28, %s31
      %p40 = scmp.eq.s32.totalorder %s23, 1
      %p41 = por %p39, %p40
      %p42 = scmp.ne.s32.totalorder %s31, %s32
      %p43 = scmp.eq.s32.totalorder %s23, 0
      %p44 = por %p42, %p43
      %p45 = scmp.ne.s32.totalorder %s31, %s32
      %p46 = scmp.eq.s32.totalorder %s24, 1
      %p47 = por %p45, %p46
      %p49 = scmp.ne.s32.totalorder %s32, %s48
      %p50 = scmp.eq.s32.totalorder %s24, 0
      %p51 = por %p49, %p50
      %s53 = sadd.s32 %s52, 1
      %p56 = scmp.eq.s32.totalorder %s18, 1
      %p57 = scmp.ne.s32.totalorder %s52, %s54
      %p58 = scmp.eq.s32.totalorder %s18, 0
      %p59 = por %p57, %p58
      %p60 = scmp.ne.s32.totalorder %s52, %s54
      %p61 = scmp.eq.s32.totalorder %s23, 1
      %p62 = por %p60, %p61
      %p63 = scmp.ne.s32.totalorder %s54, %s55
      %p64 = scmp.eq.s32.totalorder %s23, 0
      %p65 = por %p63, %p64
      %p66 = scmp.ne.s32.totalorder %s54, %s55
      %p67 = scmp.eq.s32.totalorder %s24, 1
      %p68 = por %p66, %p67
      %p70 = scmp.ne.s32.totalorder %s55, %s69
      %p71 = scmp.eq.s32.totalorder %s24, 0
      %p72 = por %p70, %p71
      %s74 = sadd.s32 %s73, 1
      %p77 = scmp.eq.s32.totalorder %s18, 1
      %p78 = scmp.ne.s32.totalorder %s73, %s75
      %p79 = scmp.eq.s32.totalorder %s18, 0
      %p80 = por %p78, %p79
      %p81 = scmp.ne.s32.totalorder %s73, %s75
      %p82 = scmp.eq.s32.totalorder %s23, 1
      %p83 = por %p81, %p82
      %p84 = scmp.ne.s32.totalorder %s75, %s76
      %p85 = scmp.eq.s32.totalorder %s23, 0
      %p86 = por %p84, %p85
      %p87 = scmp.ne.s32.totalorder %s75, %s76
      %p88 = scmp.eq.s32.totalorder %s24, 1
      %p89 = por %p87, %p88
      %p91 = scmp.ne.s32.totalorder %s76, %s90
      %p92 = scmp.eq.s32.totalorder %s24, 0
      %p93 = por %p91, %p92
      %s95 = sadd.s32 %s94, 1
      %p98 = scmp.eq.s32.totalorder %s18, 1
      %p99 = scmp.ne.s32.totalorder %s94, %s96
      %p100 = scmp.eq.s32.totalorder %s18, 0
      %p101 = por %p99, %p100
      %p102 = scmp.ne.s32.totalorder %s94, %s96
      %p103 = scmp.eq.s32.totalorder %s23, 1
      %p104 = por %p102, %p103
      %p105 = scmp.ne.s32.totalorder %s96, %s97
      %p106 = scmp.eq.s32.totalorder %s23, 0
      %p107 = por %p105, %p106
      %p108 = scmp.ne.s32.totalorder %s96, %s97
      %p109 = scmp.eq.s32.totalorder %s24, 1
      %p110 = por %p108, %p109
      %p112 = scmp.ne.s32.totalorder %s97, %s111
      %p113 = scmp.eq.s32.totalorder %s24, 0
      %p114 = por %p112, %p113
      %s116 = sadd.s32 %s115, 1
      %p119 = scmp.eq.s32.totalorder %s18, 1
      %p120 = scmp.ne.s32.totalorder %s115, %s117
      %p121 = scmp.eq.s32.totalorder %s18, 0
      %p122 = por %p120, %p121
      %p123 = scmp.ne.s32.totalorder %s115, %s117
      %p124 = scmp.eq.s32.totalorder %s23, 1
      %p125 = por %p123, %p124
      %p126 = scmp.ne.s32.totalorder %s117, %s118
      %p127 = scmp.eq.s32.totalorder %s23, 0
      %p128 = por %p126, %p127
      %p129 = scmp.ne.s32.totalorder %s117, %s118
      %p130 = scmp.eq.s32.totalorder %s24, 1
      %p131 = por %p129, %p130
      %p133 = scmp.ne.s32.totalorder %s118, %s132
      %p134 = scmp.eq.s32.totalorder %s24, 0
      %p135 = por %p133, %p134
      %s136 = ssub.s32 %s18, %s25
      %p137 = scmp.eq.s32.totalorder %s136, 0
      %s139 = sadd.s32 %s138, 1
      %s140 = scalar_select %p137, %s138, %s139
      %p143 = pneg %p137
      %p144 = scmp.eq.s32.totalorder %s18, 1
      %p145 = por %p143, %p144
      %p146 = scmp.ne.s32.totalorder %s138, %s141
      %p147 = scmp.eq.s32.totalorder %s18, 0
      %p148 = por %p146, %p147
      %p149 = scmp.ne.s32.totalorder %s138, %s141
      %p150 = scmp.eq.s32.totalorder %s23, 1
      %p151 = por %p149, %p150
      %p152 = scmp.ne.s32.totalorder %s141, %s142
      %p153 = scmp.eq.s32.totalorder %s23, 0
      %p154 = por %p152, %p153
      %p155 = scmp.ne.s32.totalorder %s141, %s142
      %p156 = scmp.eq.s32.totalorder %s24, 1
      %p157 = por %p155, %p156
      %p159 = scmp.ne.s32.totalorder %s142, %s158
      %p160 = scmp.eq.s32.totalorder %s24, 0
      %p161 = por %p159, %p160
      %p162 = scmp.le.s32.totalorder 1, %s18
      %p163 = scmp.lt.s32.totalorder %s18, 3
      %p164 = pnand %p162, %p163
      %p165 = pneg %p164
      // Predicated region
      $region9: #{tpu_custom_call.1} parent=5 // pred_check
        _
      $region10: #{tpu_custom_call.1} parent=5 // pred_check_branch
        %167 = sbr.rel (%p164) target = $region12
      $region11: #{tpu_custom_call.1} parent=5 // pred_region
        %s168 = ssub.s32 %s18, 1
        // Predicated region
        $region13: #{tpu_custom_call.1} parent=11 // pred_check
          %p169 = pneg %p65
        $region14: #{tpu_custom_call.1} parent=11 // pred_check_branch
          %171 = sbr.rel (%p169) target = $region16
        $region15: #{tpu_custom_call.1} parent=11 // pred_region
          %s173 = ssub.s32 6144, 6144
          %174 = vsyncadd [#allocation7], %s173
          %s175 = sshll.u32 [#allocation6], 4
          %s176 = int_to_ptr.vmem [resolvable:$true] %s175
          %181 = dma.hbm_to_vmem [thread:$0]  %s1, 6144, %s176, [#allocation7], 384, 384, 24
        $region16: #{tpu_custom_call.1} parent=11 // pred_fallthru
          _
        // Predicated region
        $region17: #{tpu_custom_call.1} parent=11 // pred_check
          %p182 = pneg %p86
        $region18: #{tpu_custom_call.1} parent=11 // pred_check_branch
          %184 = sbr.rel (%p182) target = $region20
        $region19: #{tpu_custom_call.1} parent=11 // pred_region
          _
        $region20: #{tpu_custom_call.1} parent=11 // pred_fallthru
          _
        // Predicated region
        $region21: #{tpu_custom_call.1} parent=11 // pred_check
          %p185 = pneg %p107
        $region22: #{tpu_custom_call.1} parent=11 // pred_check_branch
          %187 = sbr.rel (%p185) target = $region24
        $region23: #{tpu_custom_call.1} parent=11 // pred_region
          %s189 = ssub.s32 2048, 2048
          %190 = vsyncadd [#allocation7], %s189
          %s191 = sshll.u32 [#allocation8], 4
          %s192 = int_to_ptr.vmem [resolvable:$true] %s191
          %197 = dma.hbm_to_vmem [thread:$0]  %s3, 2048, %s192, [#allocation7], 128, 128, 8
        $region24: #{tpu_custom_call.1} parent=11 // pred_fallthru
          _
        // Predicated region
        $region25: #{tpu_custom_call.1} parent=11 // pred_check
          %p198 = pneg %p128
        $region26: #{tpu_custom_call.1} parent=11 // pred_check_branch
          %200 = sbr.rel (%p198) target = $region28
        $region27: #{tpu_custom_call.1} parent=11 // pred_region
          _
        $region28: #{tpu_custom_call.1} parent=11 // pred_fallthru
          _
      $region12: #{tpu_custom_call.1} parent=5 // pred_fallthru
        _
      %p201 = scmp.lt.s32.totalorder %s18, 2
      // Predicated region
      $region29: #{tpu_custom_call.1} parent=5 // pred_check
        %p202 = pneg %p201
      $region30: #{tpu_custom_call.1} parent=5 // pred_check_branch
        %204 = sbr.rel (%p202) target = $region32
      $region31: #{tpu_custom_call.1} parent=5 // pred_region
        // Predicated region
        $region33: #{tpu_custom_call.1} parent=31 // pred_check
          %p205 = pneg %p38
        $region34: #{tpu_custom_call.1} parent=31 // pred_check_branch
          %207 = sbr.rel (%p205) target = $region36
        $region35: #{tpu_custom_call.1} parent=31 // pred_region
          %s208 = sand.u32 %s28, 1
          %s209 = scalar_lea.sflag [#allocation4], %s208
          %s210 = sand.u32 %s28, 1
          %s211 = smul.addr %s210, 8
          %s212 = scalar_lea.vmem [#allocation3], %s211
          %s214 = ssub.s32 128, 128
          %215 = vsyncadd %s209, %s214
          %s216 = smul.addr %s18, 128
          %s217 = scalar_lea.hbm %s0, %s216
          %s219 = sshll.u32 %s212, 4
          %s220 = int_to_ptr.vmem [resolvable:$true] %s219
          %222 = dma.hbm_to_vmem [thread:$0]  %s217, 128, %s220, %s209
        $region36: #{tpu_custom_call.1} parent=31 // pred_fallthru
          _
      $region32: #{tpu_custom_call.1} parent=5 // pred_fallthru
        _
      %p223 = scmp.le.s32.totalorder 1, %s18
      %p224 = scmp.lt.s32.totalorder %s18, 3
      %p225 = pnand %p223, %p224
      %p226 = pneg %p225
      // Predicated region
      $region37: #{tpu_custom_call.1} parent=5 // pred_check
        _
      $region38: #{tpu_custom_call.1} parent=5 // pred_check_branch
        %228 = sbr.rel (%p225) target = $region40
      $region39: #{tpu_custom_call.1} parent=5 // pred_region
        %s229 = ssub.s32 %s18, 1
        %s230 = sand.u32 %s31, 1
        %s231 = scalar_lea.sflag [#allocation4], %s230
        %s232 = sand.u32 %s31, 1
        %s233 = smul.addr %s232, 8
        %s234 = scalar_lea.vmem [#allocation3], %s233
        // Predicated region
        $region41: #{tpu_custom_call.1} parent=39 // pred_check
          %p235 = pneg %p44
        $region42: #{tpu_custom_call.1} parent=39 // pred_check_branch
          %237 = sbr.rel (%p235) target = $region44
        $region43: #{tpu_custom_call.1} parent=39 // pred_region
          %238 = dma.done %s231, 128
        $region44: #{tpu_custom_call.1} parent=39 // pred_fallthru
          _
        // Predicated region
        $region45: #{tpu_custom_call.1} parent=39 // pred_check
          %p239 = pneg %p65
        $region46: #{tpu_custom_call.1} parent=39 // pred_check_branch
          %241 = sbr.rel (%p239) target = $region48
        $region47: #{tpu_custom_call.1} parent=39 // pred_region
          %242 = dma.done [#allocation7], 6144
        $region48: #{tpu_custom_call.1} parent=39 // pred_fallthru
          _
        // Predicated region
        $region49: #{tpu_custom_call.1} parent=39 // pred_check
          %p243 = pneg %p107
        $region50: #{tpu_custom_call.1} parent=39 // pred_check_branch
          %245 = sbr.rel (%p243) target = $region52
        $region51: #{tpu_custom_call.1} parent=39 // pred_region
          %246 = dma.done [#allocation7], 2048
        $region52: #{tpu_custom_call.1} parent=39 // pred_fallthru
          _
        %s247 = sand.u32 %s31, 1
        %s248 = scalar_lea.sflag [#allocation4], %s247
        %s249 = sand.u32 %s31, 1
        %s250 = smul.addr %s249, 8
        %s251 = scalar_lea.vmem [#allocation3], %s250
        %p252 = pneg %p44
        %p253 = pneg %p41
        %p254 = pneg %p65
        %p255 = pneg %p62
        %p256 = pneg %p86
        %p257 = pneg %p83
        %p258 = pneg %p107
        %p259 = pneg %p104
        %p260 = pneg %p128
        %p261 = pneg %p125
        %p262 = pneg %p154
        %p263 = pneg %p151
        %s264 = sand.u32 %s141, 1
        %s265 = scalar_lea.sflag [#allocation5], %s264
        %s266 = sand.u32 %s141, 1
        %s267 = smul.addr %s266, 8
        %s268 = scalar_lea.vmem [#allocation9], %s267
        %v269 = vld [vmem:[%s234] sm:$0xff]
        %v270 = vld [vmem:[#allocation6] sm:$0xff]
        %v271 = vld [vmem:[#allocation6 + $0x8] sm:$0xff]
        %v272 = vld [vmem:[#allocation6 + $0x10] sm:$0xff]
        %v273 = vld [vmem:[#allocation6 + $0x18] sm:$0xff]
        %v274 = vld [vmem:[#allocation6 + $0x20] sm:$0xff]
        %v275 = vld [vmem:[#allocation6 + $0x28] sm:$0xff]
        %v276 = vld [vmem:[#allocation6 + $0x30] sm:$0xff]
        %v277 = vld [vmem:[#allocation6 + $0x38] sm:$0xff]
        %v278 = vld [vmem:[#allocation6 + $0x40] sm:$0xff]
        %v279 = vld [vmem:[#allocation6 + $0x48] sm:$0xff]
        %v280 = vld [vmem:[#allocation6 + $0x50] sm:$0xff]
        %v281 = vld [vmem:[#allocation6 + $0x58] sm:$0xff]
        %v282 = vld [vmem:[#allocation6 + $0x60] sm:$0xff]
        %v283 = vld [vmem:[#allocation6 + $0x68] sm:$0xff]
        %v284 = vld [vmem:[#allocation6 + $0x70] sm:$0xff]
        %v285 = vld [vmem:[#allocation6 + $0x78] sm:$0xff]
        %v286 = vld [vmem:[#allocation6 + $0x80] sm:$0xff]
        %v287 = vld [vmem:[#allocation6 + $0x88] sm:$0xff]
        %v288 = vld [vmem:[#allocation6 + $0x90] sm:$0xff]
        %v289 = vld [vmem:[#allocation6 + $0x98] sm:$0xff]
        %v290 = vld [vmem:[#allocation6 + $0xa0] sm:$0xff]
        %v291 = vld [vmem:[#allocation6 + $0xa8] sm:$0xff]
        %v292 = vld [vmem:[#allocation6 + $0xb0] sm:$0xff]
        %v293 = vld [vmem:[#allocation6 + $0xb8] sm:$0xff]
        %v294 = vld [vmem:[#allocation6 + $0xc0] sm:$0xff]
        %v295 = vld [vmem:[#allocation6 + $0xc8] sm:$0xff]
        %v296 = vld [vmem:[#allocation6 + $0xd0] sm:$0xff]
        %v297 = vld [vmem:[#allocation6 + $0xd8] sm:$0xff]
        %v298 = vld [vmem:[#allocation6 + $0xe0] sm:$0xff]
        %v299 = vld [vmem:[#allocation6 + $0xe8] sm:$0xff]
        %v300 = vld [vmem:[#allocation6 + $0xf0] sm:$0xff]
        %v301 = vld [vmem:[#allocation6 + $0xf8] sm:$0xff]
        %v302 = vld [vmem:[#allocation6 + $0x100] sm:$0xff]
        %v303 = vld [vmem:[#allocation6 + $0x108] sm:$0xff]
        %v304 = vld [vmem:[#allocation6 + $0x110] sm:$0xff]
        %v305 = vld [vmem:[#allocation6 + $0x118] sm:$0xff]
        %v306 = vld [vmem:[#allocation6 + $0x120] sm:$0xff]
        %v307 = vld [vmem:[#allocation6 + $0x128] sm:$0xff]
        %v308 = vld [vmem:[#allocation6 + $0x130] sm:$0xff]
        %v309 = vld [vmem:[#allocation6 + $0x138] sm:$0xff]
        %v310 = vld [vmem:[#allocation6 + $0x140] sm:$0xff]
        %v311 = vld [vmem:[#allocation6 + $0x148] sm:$0xff]
        %v312 = vld [vmem:[#allocation6 + $0x150] sm:$0xff]
        %v313 = vld [vmem:[#allocation6 + $0x158] sm:$0xff]
        %v314 = vld [vmem:[#allocation6 + $0x160] sm:$0xff]
        %v315 = vld [vmem:[#allocation6 + $0x168] sm:$0xff]
        %v316 = vld [vmem:[#allocation6 + $0x170] sm:$0xff]
        %v317 = vld [vmem:[#allocation6 + $0x178] sm:$0xff]
        %v318 = vld [vmem:[%s2] sm:$0x7]
        %v320 = vlaneseq
        %v321 = vshrl.u32 %v320, 7
        %v322 = vsub.s32 0, %v321
        %v323 = vrot.slane %v318, %v322
        %v324 = vlaneseq
        %v325 = vshrl.u32 %v324, 7
        %v326 = vsub.s32 1, %v325
        %v327 = vrot.slane %v318, %v326
        %v328 = vlaneseq
        %v329 = vshrl.u32 %v328, 7
        %v330 = vsub.s32 2, %v329
        %v331 = vrot.slane %v318, %v330
        %335 = vmatprep.subr.mxu0 %v271
        %336 = vmatpush1.msra.mxu0 %v270
        %337 = vmatprep.subr.mxu0 %v274
        %338 = vmatpush1.msra.mxu0 %v273
        %339 = vmatprep.subr.mxu0 %v277
        %340 = vmatpush1.msra.mxu0 %v276
        %341 = vmatprep.subr.mxu0 %v280
        %342 = vmatpush1.msra.mxu0 %v279
        %343 = vmatprep.subr.mxu0 %v283
        %344 = vmatpush1.msra.mxu0 %v282
        %345 = vmatprep.subr.mxu0 %v286
        %346 = vmatpush1.msra.mxu0 %v285
        %347 = vmatprep.subr.mxu0 %v289
        %348 = vmatpush1.msra.mxu0 %v288
        %349 = vmatprep.subr.mxu0 %v292
        %350 = vmatpush1.msra.mxu0 %v291
        %351 = vmatprep.subr.mxu0 %v295
        %352 = vmatpush1.msra.mxu0 %v294
        %353 = vmatprep.subr.mxu0 %v298
        %354 = vmatpush1.msra.mxu0 %v297
        %355 = vmatprep.subr.mxu0 %v301
        %356 = vmatpush1.msra.mxu0 %v300
        %357 = vmatprep.subr.mxu0 %v304
        %358 = vmatpush1.msra.mxu0 %v303
        %359 = vmatprep.subr.mxu0 %v307
        %360 = vmatpush1.msra.mxu0 %v306
        %361 = vmatprep.subr.mxu0 %v310
        %362 = vmatpush1.msra.mxu0 %v309
        %363 = vmatprep.subr.mxu0 %v313
        %364 = vmatpush1.msra.mxu0 %v312
        %365 = vmatprep.subr.mxu0 %v316
        %366 = vmatpush1.msra.mxu0 %v315
        %367 = vmatprep.subr.mxu0 0.0
        %368 = vmatpush1.msra.mxu0 0.0
        %369 = vmatprep.subr.mxu0 0.0
        %370 = vmatpush1.msra.mxu0 0.0
        %371 = vmatprep.subr.mxu0 0.0
        %372 = vmatpush1.msra.mxu0 0.0
        %373 = vmatprep.subr.mxu0 0.0
        %374 = vmatpush1.msra.mxu0 0.0
        %375 = vmatprep.subr.mxu0 0.0
        %376 = vmatpush1.msra.mxu0 0.0
        %377 = vmatprep.subr.mxu0 0.0
        %378 = vmatpush1.msra.mxu0 0.0
        %379 = vmatprep.subr.mxu0 0.0
        %380 = vmatpush1.msra.mxu0 0.0
        %381 = vmatprep.subr.mxu0 0.0
        %382 = vmatpush1.msra.mxu0 0.0
        %383 = vmatprep.subr.mxu0 0.0
        %384 = vmatpush1.msra.mxu0 0.0
        %385 = vmatprep.subr.mxu0 0.0
        %386 = vmatpush1.msra.mxu0 0.0
        %387 = vmatprep.subr.mxu0 0.0
        %388 = vmatpush1.msra.mxu0 0.0
        %389 = vmatprep.subr.mxu0 0.0
        %390 = vmatpush1.msra.mxu0 0.0
        %391 = vmatprep.subr.mxu0 0.0
        %392 = vmatpush1.msra.mxu0 0.0
        %393 = vmatprep.subr.mxu0 0.0
        %394 = vmatpush1.msra.mxu0 0.0
        %395 = vmatprep.subr.mxu0 0.0
        %396 = vmatpush1.msra.mxu0 0.0
        %397 = vmatprep.subr.mxu0 0.0
        %398 = vmatpush1.msra.mxu0 0.0
        %399 = vmatprep.mubr.f32.mxu0 0.0
        %400 = vmatmul.mubr.f32.gmra.mrb[0].mxu0 %v269
        %v401 = vpop.f32.mrb[0].mxu0
        %v402 = vadd.f32 %v323, %v401
        %v403 = vpop.f32.mrb[0].mxu0
        %v404 = vadd.f32 %v327, %v403
        %405 = vdwg.mxu0
        %406 = vmatprep.subr.mxu0 0.0
        %407 = vmatpush1.msra.mxu0 %v272
        %408 = vmatprep.subr.mxu0 0.0
        %409 = vmatpush1.msra.mxu0 %v275
        %410 = vmatprep.subr.mxu0 0.0
        %411 = vmatpush1.msra.mxu0 %v278
        %412 = vmatprep.subr.mxu0 0.0
        %413 = vmatpush1.msra.mxu0 %v281
        %414 = vmatprep.subr.mxu0 0.0
        %415 = vmatpush1.msra.mxu0 %v284
        %416 = vmatprep.subr.mxu0 0.0
        %417 = vmatpush1.msra.mxu0 %v287
        %418 = vmatprep.subr.mxu0 0.0
        %419 = vmatpush1.msra.mxu0 %v290
        %420 = vmatprep.subr.mxu0 0.0
        %421 = vmatpush1.msra.mxu0 %v293
        %422 = vmatprep.subr.mxu0 0.0
        %423 = vmatpush1.msra.mxu0 %v296
        %424 = vmatprep.subr.mxu0 0.0
        %425 = vmatpush1.msra.mxu0 %v299
        %426 = vmatprep.subr.mxu0 0.0
        %427 = vmatpush1.msra.mxu0 %v302
        %428 = vmatprep.subr.mxu0 0.0
        %429 = vmatpush1.msra.mxu0 %v305
        %430 = vmatprep.subr.mxu0 0.0
        %431 = vmatpush1.msra.mxu0 %v308
        %432 = vmatprep.subr.mxu0 0.0
        %433 = vmatpush1.msra.mxu0 %v311
        %434 = vmatprep.subr.mxu0 0.0
        %435 = vmatpush1.msra.mxu0 %v314
        %436 = vmatprep.subr.mxu0 0.0
        %437 = vmatpush1.msra.mxu0 %v317
        %438 = vmatprep.subr.mxu0 0.0
        %439 = vmatpush1.msra.mxu0 0.0
        %440 = vmatprep.subr.mxu0 0.0
        %441 = vmatpush1.msra.mxu0 0.0
        %442 = vmatprep.subr.mxu0 0.0
        %443 = vmatpush1.msra.mxu0 0.0
        %444 = vmatprep.subr.mxu0 0.0
        %445 = vmatpush1.msra.mxu0 0.0
        %446 = vmatprep.subr.mxu0 0.0
        %447 = vmatpush1.msra.mxu0 0.0
        %448 = vmatprep.subr.mxu0 0.0
        %449 = vmatpush1.msra.mxu0 0.0
        %450 = vmatprep.subr.mxu0 0.0
        %451 = vmatpush1.msra.mxu0 0.0
        %452 = vmatprep.subr.mxu0 0.0
        %453 = vmatpush1.msra.mxu0 0.0
        %454 = vmatprep.subr.mxu0 0.0
        %455 = vmatpush1.msra.mxu0 0.0
        %456 = vmatprep.subr.mxu0 0.0
        %457 = vmatpush1.msra.mxu0 0.0
        %458 = vmatprep.subr.mxu0 0.0
        %459 = vmatpush1.msra.mxu0 0.0
        %460 = vmatprep.subr.mxu0 0.0
        %461 = vmatpush1.msra.mxu0 0.0
        %462 = vmatprep.subr.mxu0 0.0
        %463 = vmatpush1.msra.mxu0 0.0
        %464 = vmatprep.subr.mxu0 0.0
        %465 = vmatpush1.msra.mxu0 0.0
        %466 = vmatprep.subr.mxu0 0.0
        %467 = vmatpush1.msra.mxu0 0.0
        %468 = vmatprep.subr.mxu0 0.0
        %469 = vmatpush1.msra.mxu0 0.0
        %470 = vmatprep.mubr.f32.mxu0 0.0
        %471 = vmatmul.mubr.f32.gmra.mrb[0].mxu0 %v269
        %v472 = vpop.f32.mrb[0].mxu0
        %v473 = vadd.f32 %v331, %v472
        %v474 = vpop.f32.mrb[0].mxu0
        %475 = vdwg.mxu0
        %vm476 = vcmask 261120
        %v478 = vsel %vm476, %v402, 0
        %v481 = vsel %vm476, %v404, 0
        %483 = vmatprep.subr.mxu0 0.0
        %484 = vmatpush1.xpose.msra.mxu0 %v481
        %485 = vmatprep.subr.mxu0 0.0
        %486 = vmatpush1.xpose.msra.mxu0 0.0
        %487 = vmatprep.subr.mxu0 0.0
        %488 = vmatpush1.xpose.msra.mxu0 0.0
        %489 = vmatprep.subr.mxu0 0.0
        %490 = vmatpush1.xpose.msra.mxu0 0.0
        %491 = vmatprep.subr.mxu0 0.0
        %492 = vmatpush1.xpose.msra.mxu0 0.0
        %493 = vmatprep.subr.mxu0 0.0
        %494 = vmatpush1.xpose.msra.mxu0 0.0
        %495 = vmatprep.subr.mxu0 0.0
        %496 = vmatpush1.xpose.msra.mxu0 0.0
        %497 = vmatprep.subr.mxu0 0.0
        %498 = vmatpush1.xpose.msra.mxu0 0.0
        %499 = vmatprep.subr.mxu0 0.0
        %500 = vmatpush1.xpose.msra.mxu0 0.0
        %501 = vmatprep.subr.mxu0 0.0
        %502 = vmatpush1.xpose.msra.mxu0 0.0
        %503 = vmatprep.subr.mxu0 0.0
        %504 = vmatpush1.xpose.msra.mxu0 0.0
        %505 = vmatprep.subr.mxu0 0.0
        %506 = vmatpush1.xpose.msra.mxu0 0.0
        %507 = vmatprep.subr.mxu0 0.0
        %508 = vmatpush1.xpose.msra.mxu0 0.0
        %509 = vmatprep.subr.mxu0 0.0
        %510 = vmatpush1.xpose.msra.mxu0 0.0
        %511 = vmatprep.subr.mxu0 0.0
        %512 = vmatpush1.xpose.msra.mxu0 0.0
        %513 = vmatprep.subr.mxu0 0.0
        %514 = vmatpush1.xpose.msra.mxu0 0.0
        %515 = vmatprep.subr.mxu0 0.0
        %516 = vmatpush1.xpose.msra.mxu0 0.0
        %517 = vmatprep.subr.mxu0 0.0
        %518 = vmatpush1.xpose.msra.mxu0 0.0
        %519 = vmatprep.subr.mxu0 0.0
        %520 = vmatpush1.xpose.msra.mxu0 0.0
        %521 = vmatprep.subr.mxu0 0.0
        %522 = vmatpush1.xpose.msra.mxu0 0.0
        %523 = vmatprep.subr.mxu0 0.0
        %524 = vmatpush1.xpose.msra.mxu0 0.0
        %525 = vmatprep.subr.mxu0 0.0
        %526 = vmatpush1.xpose.msra.mxu0 0.0
        %527 = vmatprep.subr.mxu0 0.0
        %528 = vmatpush1.xpose.msra.mxu0 0.0
        %529 = vmatprep.subr.mxu0 0.0
        %530 = vmatpush1.xpose.msra.mxu0 0.0
        %531 = vmatprep.subr.mxu0 0.0
        %532 = vmatpush1.xpose.msra.mxu0 0.0
        %533 = vmatprep.subr.mxu0 0.0
        %534 = vmatpush1.xpose.msra.mxu0 0.0
        %535 = vmatprep.subr.mxu0 0.0
        %536 = vmatpush1.xpose.msra.mxu0 0.0
        %537 = vmatprep.subr.mxu0 0.0
        %538 = vmatpush1.xpose.msra.mxu0 0.0
        %539 = vmatprep.subr.mxu0 0.0
        %540 = vmatpush1.xpose.msra.mxu0 0.0
        %541 = vmatprep.subr.mxu0 0.0
        %542 = vmatpush1.xpose.msra.mxu0 0.0
        %543 = vmatprep.subr.mxu0 0.0
        %544 = vmatpush1.xpose.msra.mxu0 0.0
        %545 = vmatprep.subr.mxu0 0.0
        %546 = vmatpush1.xpose.msra.mxu0 0.0
        %547 = vmatprep.mubr.f32.mxu0 0.0
        %548 = vmatmul.mubr.f32.gmra.mrb[0].mxu0 %v478
        %v549 = vpop.f32.mrb[0].mxu0
        %v550 = vadd.f32 0.0, %v549
        %v551 = vpop.f32.mrb[0].mxu0
        %552 = vdwg.mxu0
        %vm553 = vcmask 64512
        %v554 = vsel %vm553, %v550, -inf
        %555 = vmax.xlane.f32.xlu0 %v554
        %v556 = vpop.xlane.xlu0 %555
        %v557 = vsub.f32 %v550, %v556
        %v558 = vmul.f32 %v557, 1.442695
        %v559 = vpow.pop %v558
        %v560 = vsel %vm553, %v559, 0.0
        %561 = vadd.xlane.f32.xlu0 %v560
        %v562 = vpop.xlane.xlu0 %561
        %v563 = vrcp.pop %v562
        %v564 = vmul.f32 %v559, %v563
        %v566 = vsel %vm553, %v564, 0
        %568 = vmatprep.subr.mxu0 0.0
        %569 = vmatpush1.msra.mxu0 %v473
        %570 = vmatprep.subr.mxu0 0.0
        %571 = vmatpush1.msra.mxu0 0.0
        %572 = vmatprep.subr.mxu0 0.0
        %573 = vmatpush1.msra.mxu0 0.0
        %574 = vmatprep.subr.mxu0 0.0
        %575 = vmatpush1.msra.mxu0 0.0
        %576 = vmatprep.subr.mxu0 0.0
        %577 = vmatpush1.msra.mxu0 0.0
        %578 = vmatprep.subr.mxu0 0.0
        %579 = vmatpush1.msra.mxu0 0.0
        %580 = vmatprep.subr.mxu0 0.0
        %581 = vmatpush1.msra.mxu0 0.0
        %582 = vmatprep.subr.mxu0 0.0
        %583 = vmatpush1.msra.mxu0 0.0
        %584 = vmatprep.subr.mxu0 0.0
        %585 = vmatpush1.msra.mxu0 0.0
        %586 = vmatprep.subr.mxu0 0.0
        %587 = vmatpush1.msra.mxu0 0.0
        %588 = vmatprep.subr.mxu0 0.0
        %589 = vmatpush1.msra.mxu0 0.0
        %590 = vmatprep.subr.mxu0 0.0
        %591 = vmatpush1.msra.mxu0 0.0
        %592 = vmatprep.subr.mxu0 0.0
        %593 = vmatpush1.msra.mxu0 0.0
        %594 = vmatprep.subr.mxu0 0.0
        %595 = vmatpush1.msra.mxu0 0.0
        %596 = vmatprep.subr.mxu0 0.0
        %597 = vmatpush1.msra.mxu0 0.0
        %598 = vmatprep.subr.mxu0 0.0
        %599 = vmatpush1.msra.mxu0 0.0
        %600 = vmatprep.subr.mxu0 0.0
        %601 = vmatpush1.msra.mxu0 0.0
        %602 = vmatprep.subr.mxu0 0.0
        %603 = vmatpush1.msra.mxu0 0.0
        %604 = vmatprep.subr.mxu0 0.0
        %605 = vmatpush1.msra.mxu0 0.0
        %606 = vmatprep.subr.mxu0 0.0
        %607 = vmatpush1.msra.mxu0 0.0
        %608 = vmatprep.subr.mxu0 0.0
        %609 = vmatpush1.msra.mxu0 0.0
        %610 = vmatprep.subr.mxu0 0.0
        %611 = vmatpush1.msra.mxu0 0.0
        %612 = vmatprep.subr.mxu0 0.0
        %613 = vmatpush1.msra.mxu0 0.0
        %614 = vmatprep.subr.mxu0 0.0
        %615 = vmatpush1.msra.mxu0 0.0
        %616 = vmatprep.subr.mxu0 0.0
        %617 = vmatpush1.msra.mxu0 0.0
        %618 = vmatprep.subr.mxu0 0.0
        %619 = vmatpush1.msra.mxu0 0.0
        %620 = vmatprep.subr.mxu0 0.0
        %621 = vmatpush1.msra.mxu0 0.0
        %622 = vmatprep.subr.mxu0 0.0
        %623 = vmatpush1.msra.mxu0 0.0
        %624 = vmatprep.subr.mxu0 0.0
        %625 = vmatpush1.msra.mxu0 0.0
        %626 = vmatprep.subr.mxu0 0.0
        %627 = vmatpush1.msra.mxu0 0.0
        %628 = vmatprep.subr.mxu0 0.0
        %629 = vmatpush1.msra.mxu0 0.0
        %630 = vmatprep.subr.mxu0 0.0
        %631 = vmatpush1.msra.mxu0 0.0
        %632 = vmatprep.mubr.f32.mxu0 0.0
        %633 = vmatmul.mubr.f32.gmra.mrb[0].mxu0 %v566
        %v634 = vpop.f32.mrb[0].mxu0
        %v635 = vadd.f32 0.0, %v634
        %v636 = vpop.f32.mrb[0].mxu0
        %637 = vdwg.mxu0
        %638 = vst.msk [vmem:[#allocation2] sm:$0xff] %vm476, %v635
        %639 = vrot.lane.b32.xlu0 %v402, 96
        %v640 = vpop.permute.xlu0 %639
        %641 = vrot.lane.b32.xlu0 %v404, 96
        %v642 = vpop.permute.xlu0 %641
        %v643 = vsel %vm476, %v640, 0
        %v645 = vsel %vm476, %v642, 0
        %647 = vmatprep.subr.mxu0 0.0
        %648 = vmatpush1.xpose.msra.mxu0 %v645
        %649 = vmatprep.subr.mxu0 0.0
        %650 = vmatpush1.xpose.msra.mxu0 0.0
        %651 = vmatprep.subr.mxu0 0.0
        %652 = vmatpush1.xpose.msra.mxu0 0.0
        %653 = vmatprep.subr.mxu0 0.0
        %654 = vmatpush1.xpose.msra.mxu0 0.0
        %655 = vmatprep.subr.mxu0 0.0
        %656 = vmatpush1.xpose.msra.mxu0 0.0
        %657 = vmatprep.subr.mxu0 0.0
        %658 = vmatpush1.xpose.msra.mxu0 0.0
        %659 = vmatprep.subr.mxu0 0.0
        %660 = vmatpush1.xpose.msra.mxu0 0.0
        %661 = vmatprep.subr.mxu0 0.0
        %662 = vmatpush1.xpose.msra.mxu0 0.0
        %663 = vmatprep.subr.mxu0 0.0
        %664 = vmatpush1.xpose.msra.mxu0 0.0
        %665 = vmatprep.subr.mxu0 0.0
        %666 = vmatpush1.xpose.msra.mxu0 0.0
        %667 = vmatprep.subr.mxu0 0.0
        %668 = vmatpush1.xpose.msra.mxu0 0.0
        %669 = vmatprep.subr.mxu0 0.0
        %670 = vmatpush1.xpose.msra.mxu0 0.0
        %671 = vmatprep.subr.mxu0 0.0
        %672 = vmatpush1.xpose.msra.mxu0 0.0
        %673 = vmatprep.subr.mxu0 0.0
        %674 = vmatpush1.xpose.msra.mxu0 0.0
        %675 = vmatprep.subr.mxu0 0.0
        %676 = vmatpush1.xpose.msra.mxu0 0.0
        %677 = vmatprep.subr.mxu0 0.0
        %678 = vmatpush1.xpose.msra.mxu0 0.0
        %679 = vmatprep.subr.mxu0 0.0
        %680 = vmatpush1.xpose.msra.mxu0 0.0
        %681 = vmatprep.subr.mxu0 0.0
        %682 = vmatpush1.xpose.msra.mxu0 0.0
        %683 = vmatprep.subr.mxu0 0.0
        %684 = vmatpush1.xpose.msra.mxu0 0.0
        %685 = vmatprep.subr.mxu0 0.0
        %686 = vmatpush1.xpose.msra.mxu0 0.0
        %687 = vmatprep.subr.mxu0 0.0
        %688 = vmatpush1.xpose.msra.mxu0 0.0
        %689 = vmatprep.subr.mxu0 0.0
        %690 = vmatpush1.xpose.msra.mxu0 0.0
        %691 = vmatprep.subr.mxu0 0.0
        %692 = vmatpush1.xpose.msra.mxu0 0.0
        %693 = vmatprep.subr.mxu0 0.0
        %694 = vmatpush1.xpose.msra.mxu0 0.0
        %695 = vmatprep.subr.mxu0 0.0
        %696 = vmatpush1.xpose.msra.mxu0 0.0
        %697 = vmatprep.subr.mxu0 0.0
        %698 = vmatpush1.xpose.msra.mxu0 0.0
        %699 = vmatprep.subr.mxu0 0.0
        %700 = vmatpush1.xpose.msra.mxu0 0.0
        %701 = vmatprep.subr.mxu0 0.0
        %702 = vmatpush1.xpose.msra.mxu0 0.0
        %703 = vmatprep.subr.mxu0 0.0
        %704 = vmatpush1.xpose.msra.mxu0 0.0
        %705 = vmatprep.subr.mxu0 0.0
        %706 = vmatpush1.xpose.msra.mxu0 0.0
        %707 = vmatprep.subr.mxu0 0.0
        %708 = vmatpush1.xpose.msra.mxu0 0.0
        %709 = vmatprep.subr.mxu0 0.0
        %710 = vmatpush1.xpose.msra.mxu0 0.0
        %711 = vmatprep.mubr.f32.mxu0 0.0
        %712 = vmatmul.mubr.f32.gmra.mrb[0].mxu0 %v643
        %v713 = vpop.f32.mrb[0].mxu0
        %v714 = vadd.f32 0.0, %v713
        %v715 = vpop.f32.mrb[0].mxu0
        %716 = vdwg.mxu0
        %v717 = vsel %vm553, %v714, -inf
        %718 = vmax.xlane.f32.xlu0 %v717
        %v719 = vpop.xlane.xlu0 %718
        %v720 = vsub.f32 %v714, %v719
        %v721 = vmul.f32 %v720, 1.442695
        %v722 = vpow.pop %v721
        %v723 = vsel %vm553, %v722, 0.0
        %724 = vadd.xlane.f32.xlu0 %v723
        %v725 = vpop.xlane.xlu0 %724
        %v726 = vrcp.pop %v725
        %v727 = vmul.f32 %v722, %v726
        %729 = vrot.lane.b32.xlu0 %v473, 96
        %v730 = vpop.permute.xlu0 %729
        %v733 = vsel %vm553, %v727, 0
        %735 = vmatprep.subr.mxu0 0.0
        %736 = vmatpush1.msra.mxu0 %v730
        %737 = vmatprep.subr.mxu0 0.0
        %738 = vmatpush1.msra.mxu0 0.0
        %739 = vmatprep.subr.mxu0 0.0
        %740 = vmatpush1.msra.mxu0 0.0
        %741 = vmatprep.subr.mxu0 0.0
        %742 = vmatpush1.msra.mxu0 0.0
        %743 = vmatprep.subr.mxu0 0.0
        %744 = vmatpush1.msra.mxu0 0.0
        %745 = vmatprep.subr.mxu0 0.0
        %746 = vmatpush1.msra.mxu0 0.0
        %747 = vmatprep.subr.mxu0 0.0
        %748 = vmatpush1.msra.mxu0 0.0
        %749 = vmatprep.subr.mxu0 0.0
        %750 = vmatpush1.msra.mxu0 0.0
        %751 = vmatprep.subr.mxu0 0.0
        %752 = vmatpush1.msra.mxu0 0.0
        %753 = vmatprep.subr.mxu0 0.0
        %754 = vmatpush1.msra.mxu0 0.0
        %755 = vmatprep.subr.mxu0 0.0
        %756 = vmatpush1.msra.mxu0 0.0
        %757 = vmatprep.subr.mxu0 0.0
        %758 = vmatpush1.msra.mxu0 0.0
        %759 = vmatprep.subr.mxu0 0.0
        %760 = vmatpush1.msra.mxu0 0.0
        %761 = vmatprep.subr.mxu0 0.0
        %762 = vmatpush1.msra.mxu0 0.0
        %763 = vmatprep.subr.mxu0 0.0
        %764 = vmatpush1.msra.mxu0 0.0
        %765 = vmatprep.subr.mxu0 0.0
        %766 = vmatpush1.msra.mxu0 0.0
        %767 = vmatprep.subr.mxu0 0.0
        %768 = vmatpush1.msra.mxu0 0.0
        %769 = vmatprep.subr.mxu0 0.0
        %770 = vmatpush1.msra.mxu0 0.0
        %771 = vmatprep.subr.mxu0 0.0
        %772 = vmatpush1.msra.mxu0 0.0
        %773 = vmatprep.subr.mxu0 0.0
        %774 = vmatpush1.msra.mxu0 0.0
        %775 = vmatprep.subr.mxu0 0.0
        %776 = vmatpush1.msra.mxu0 0.0
        %777 = vmatprep.subr.mxu0 0.0
        %778 = vmatpush1.msra.mxu0 0.0
        %779 = vmatprep.subr.mxu0 0.0
        %780 = vmatpush1.msra.mxu0 0.0
        %781 = vmatprep.subr.mxu0 0.0
        %782 = vmatpush1.msra.mxu0 0.0
        %783 = vmatprep.subr.mxu0 0.0
        %784 = vmatpush1.msra.mxu0 0.0
        %785 = vmatprep.subr.mxu0 0.0
        %786 = vmatpush1.msra.mxu0 0.0
        %787 = vmatprep.subr.mxu0 0.0
        %788 = vmatpush1.msra.mxu0 0.0
        %789 = vmatprep.subr.mxu0 0.0
        %790 = vmatpush1.msra.mxu0 0.0
        %791 = vmatprep.subr.mxu0 0.0
        %792 = vmatpush1.msra.mxu0 0.0
        %793 = vmatprep.subr.mxu0 0.0
        %794 = vmatpush1.msra.mxu0 0.0
        %795 = vmatprep.subr.mxu0 0.0
        %796 = vmatpush1.msra.mxu0 0.0
        %797 = vmatprep.subr.mxu0 0.0
        %798 = vmatpush1.msra.mxu0 0.0
        %799 = vmatprep.mubr.f32.mxu0 0.0
        %800 = vmatmul.mubr.f32.gmra.mrb[0].mxu0 %v733
        %v801 = vpop.f32.mrb[0].mxu0
        %v802 = vadd.f32 0.0, %v801
        %v803 = vpop.f32.mrb[0].mxu0
        %804 = vdwg.mxu0
        %806 = vrot.lane.b32.xlu0 %v802, 32
        %v807 = vpop.permute.xlu0 %806
        %vm809 = vcmask 523520
        %810 = vst.msk [vmem:[#allocation2] sm:$0xff] %vm809, %v807
        %811 = vrot.lane.b32.xlu0 %v402, 64
        %v812 = vpop.permute.xlu0 %811
        %813 = vrot.lane.b32.xlu0 %v404, 64
        %v814 = vpop.permute.xlu0 %813
        %v815 = vsel %vm476, %v812, 0
        %v817 = vsel %vm476, %v814, 0
        %819 = vmatprep.subr.mxu0 0.0
        %820 = vmatpush1.xpose.msra.mxu0 %v817
        %821 = vmatprep.subr.mxu0 0.0
        %822 = vmatpush1.xpose.msra.mxu0 0.0
        %823 = vmatprep.subr.mxu0 0.0
        %824 = vmatpush1.xpose.msra.mxu0 0.0
        %825 = vmatprep.subr.mxu0 0.0
        %826 = vmatpush1.xpose.msra.mxu0 0.0
        %827 = vmatprep.subr.mxu0 0.0
        %828 = vmatpush1.xpose.msra.mxu0 0.0
        %829 = vmatprep.subr.mxu0 0.0
        %830 = vmatpush1.xpose.msra.mxu0 0.0
        %831 = vmatprep.subr.mxu0 0.0
        %832 = vmatpush1.xpose.msra.mxu0 0.0
        %833 = vmatprep.subr.mxu0 0.0
        %834 = vmatpush1.xpose.msra.mxu0 0.0
        %835 = vmatprep.subr.mxu0 0.0
        %836 = vmatpush1.xpose.msra.mxu0 0.0
        %837 = vmatprep.subr.mxu0 0.0
        %838 = vmatpush1.xpose.msra.mxu0 0.0
        %839 = vmatprep.subr.mxu0 0.0
        %840 = vmatpush1.xpose.msra.mxu0 0.0
        %841 = vmatprep.subr.mxu0 0.0
        %842 = vmatpush1.xpose.msra.mxu0 0.0
        %843 = vmatprep.subr.mxu0 0.0
        %844 = vmatpush1.xpose.msra.mxu0 0.0
        %845 = vmatprep.subr.mxu0 0.0
        %846 = vmatpush1.xpose.msra.mxu0 0.0
        %847 = vmatprep.subr.mxu0 0.0
        %848 = vmatpush1.xpose.msra.mxu0 0.0
        %849 = vmatprep.subr.mxu0 0.0
        %850 = vmatpush1.xpose.msra.mxu0 0.0
        %851 = vmatprep.subr.mxu0 0.0
        %852 = vmatpush1.xpose.msra.mxu0 0.0
        %853 = vmatprep.subr.mxu0 0.0
        %854 = vmatpush1.xpose.msra.mxu0 0.0
        %855 = vmatprep.subr.mxu0 0.0
        %856 = vmatpush1.xpose.msra.mxu0 0.0
        %857 = vmatprep.subr.mxu0 0.0
        %858 = vmatpush1.xpose.msra.mxu0 0.0
        %859 = vmatprep.subr.mxu0 0.0
        %860 = vmatpush1.xpose.msra.mxu0 0.0
        %861 = vmatprep.subr.mxu0 0.0
        %862 = vmatpush1.xpose.msra.mxu0 0.0
        %863 = vmatprep.subr.mxu0 0.0
        %864 = vmatpush1.xpose.msra.mxu0 0.0
        %865 = vmatprep.subr.mxu0 0.0
        %866 = vmatpush1.xpose.msra.mxu0 0.0
        %867 = vmatprep.subr.mxu0 0.0
        %868 = vmatpush1.xpose.msra.mxu0 0.0
        %869 = vmatprep.subr.mxu0 0.0
        %870 = vmatpush1.xpose.msra.mxu0 0.0
        %871 = vmatprep.subr.mxu0 0.0
        %872 = vmatpush1.xpose.msra.mxu0 0.0
        %873 = vmatprep.subr.mxu0 0.0
        %874 = vmatpush1.xpose.msra.mxu0 0.0
        %875 = vmatprep.subr.mxu0 0.0
        %876 = vmatpush1.xpose.msra.mxu0 0.0
        %877 = vmatprep.subr.mxu0 0.0
        %878 = vmatpush1.xpose.msra.mxu0 0.0
        %879 = vmatprep.subr.mxu0 0.0
        %880 = vmatpush1.xpose.msra.mxu0 0.0
        %881 = vmatprep.subr.mxu0 0.0
        %882 = vmatpush1.xpose.msra.mxu0 0.0
        %883 = vmatprep.mubr.f32.mxu0 0.0
        %884 = vmatmul.mubr.f32.gmra.mrb[0].mxu0 %v815
        %v885 = vpop.f32.mrb[0].mxu0
        %v886 = vadd.f32 0.0, %v885
        %v887 = vpop.f32.mrb[0].mxu0
        %888 = vdwg.mxu0
        %v889 = vsel %vm553, %v886, -inf
        %890 = vmax.xlane.f32.xlu0 %v889
        %v891 = vpop.xlane.xlu0 %890
        %v892 = vsub.f32 %v886, %v891
        %v893 = vmul.f32 %v892, 1.442695
        %v894 = vpow.pop %v893
        %v895 = vsel %vm553, %v894, 0.0
        %896 = vadd.xlane.f32.xlu0 %v895
        %v897 = vpop.xlane.xlu0 %896
        %v898 = vrcp.pop %v897
        %v899 = vmul.f32 %v894, %v898
        %900 = vrot.lane.b32.xlu0 %v473, 64
        %v901 = vpop.permute.xlu0 %900
        %v904 = vsel %vm553, %v899, 0
        %906 = vmatprep.subr.mxu0 0.0
        %907 = vmatpush1.msra.mxu0 %v901
        %908 = vmatprep.subr.mxu0 0.0
        %909 = vmatpush1.msra.mxu0 0.0
        %910 = vmatprep.subr.mxu0 0.0
        %911 = vmatpush1.msra.mxu0 0.0
        %912 = vmatprep.subr.mxu0 0.0
        %913 = vmatpush1.msra.mxu0 0.0
        %914 = vmatprep.subr.mxu0 0.0
        %915 = vmatpush1.msra.mxu0 0.0
        %916 = vmatprep.subr.mxu0 0.0
        %917 = vmatpush1.msra.mxu0 0.0
        %918 = vmatprep.subr.mxu0 0.0
        %919 = vmatpush1.msra.mxu0 0.0
        %920 = vmatprep.subr.mxu0 0.0
        %921 = vmatpush1.msra.mxu0 0.0
        %922 = vmatprep.subr.mxu0 0.0
        %923 = vmatpush1.msra.mxu0 0.0
        %924 = vmatprep.subr.mxu0 0.0
        %925 = vmatpush1.msra.mxu0 0.0
        %926 = vmatprep.subr.mxu0 0.0
        %927 = vmatpush1.msra.mxu0 0.0
        %928 = vmatprep.subr.mxu0 0.0
        %929 = vmatpush1.msra.mxu0 0.0
        %930 = vmatprep.subr.mxu0 0.0
        %931 = vmatpush1.msra.mxu0 0.0
        %932 = vmatprep.subr.mxu0 0.0
        %933 = vmatpush1.msra.mxu0 0.0
        %934 = vmatprep.subr.mxu0 0.0
        %935 = vmatpush1.msra.mxu0 0.0
        %936 = vmatprep.subr.mxu0 0.0
        %937 = vmatpush1.msra.mxu0 0.0
        %938 = vmatprep.subr.mxu0 0.0
        %939 = vmatpush1.msra.mxu0 0.0
        %940 = vmatprep.subr.mxu0 0.0
        %941 = vmatpush1.msra.mxu0 0.0
        %942 = vmatprep.subr.mxu0 0.0
        %943 = vmatpush1.msra.mxu0 0.0
        %944 = vmatprep.subr.mxu0 0.0
        %945 = vmatpush1.msra.mxu0 0.0
        %946 = vmatprep.subr.mxu0 0.0
        %947 = vmatpush1.msra.mxu0 0.0
        %948 = vmatprep.subr.mxu0 0.0
        %949 = vmatpush1.msra.mxu0 0.0
        %950 = vmatprep.subr.mxu0 0.0
        %951 = vmatpush1.msra.mxu0 0.0
        %952 = vmatprep.subr.mxu0 0.0
        %953 = vmatpush1.msra.mxu0 0.0
        %954 = vmatprep.subr.mxu0 0.0
        %955 = vmatpush1.msra.mxu0 0.0
        %956 = vmatprep.subr.mxu0 0.0
        %957 = vmatpush1.msra.mxu0 0.0
        %958 = vmatprep.subr.mxu0 0.0
        %959 = vmatpush1.msra.mxu0 0.0
        %960 = vmatprep.subr.mxu0 0.0
        %961 = vmatpush1.msra.mxu0 0.0
        %962 = vmatprep.subr.mxu0 0.0
        %963 = vmatpush1.msra.mxu0 0.0
        %964 = vmatprep.subr.mxu0 0.0
        %965 = vmatpush1.msra.mxu0 0.0
        %966 = vmatprep.subr.mxu0 0.0
        %967 = vmatpush1.msra.mxu0 0.0
        %968 = vmatprep.subr.mxu0 0.0
        %969 = vmatpush1.msra.mxu0 0.0
        %970 = vmatprep.mubr.f32.mxu0 0.0
        %971 = vmatmul.mubr.f32.gmra.mrb[0].mxu0 %v904
        %v972 = vpop.f32.mrb[0].mxu0
        %v973 = vadd.f32 0.0, %v972
        %v974 = vpop.f32.mrb[0].mxu0
        %975 = vdwg.mxu0
        %977 = vrot.lane.b32.xlu0 %v973, 64
        %v978 = vpop.permute.xlu0 %977
        %vm980 = vcmask 785920
        %981 = vst.msk [vmem:[#allocation2] sm:$0xff] %vm980, %v978
        %982 = vrot.lane.b32.xlu0 %v402, 32
        %v983 = vpop.permute.xlu0 %982
        %984 = vrot.lane.b32.xlu0 %v404, 32
        %v985 = vpop.permute.xlu0 %984
        %v986 = vsel %vm476, %v983, 0
        %v988 = vsel %vm476, %v985, 0
        %990 = vmatprep.subr.mxu0 0.0
        %991 = vmatpush1.xpose.msra.mxu0 %v988
        %992 = vmatprep.subr.mxu0 0.0
        %993 = vmatpush1.xpose.msra.mxu0 0.0
        %994 = vmatprep.subr.mxu0 0.0
        %995 = vmatpush1.xpose.msra.mxu0 0.0
        %996 = vmatprep.subr.mxu0 0.0
        %997 = vmatpush1.xpose.msra.mxu0 0.0
        %998 = vmatprep.subr.mxu0 0.0
        %999 = vmatpush1.xpose.msra.mxu0 0.0
        %1000 = vmatprep.subr.mxu0 0.0
        %1001 = vmatpush1.xpose.msra.mxu0 0.0
        %1002 = vmatprep.subr.mxu0 0.0
        %1003 = vmatpush1.xpose.msra.mxu0 0.0
        %1004 = vmatprep.subr.mxu0 0.0
        %1005 = vmatpush1.xpose.msra.mxu0 0.0
        %1006 = vmatprep.subr.mxu0 0.0
        %1007 = vmatpush1.xpose.msra.mxu0 0.0
        %1008 = vmatprep.subr.mxu0 0.0
        %1009 = vmatpush1.xpose.msra.mxu0 0.0
        %1010 = vmatprep.subr.mxu0 0.0
        %1011 = vmatpush1.xpose.msra.mxu0 0.0
        %1012 = vmatprep.subr.mxu0 0.0
        %1013 = vmatpush1.xpose.msra.mxu0 0.0
        %1014 = vmatprep.subr.mxu0 0.0
        %1015 = vmatpush1.xpose.msra.mxu0 0.0
        %1016 = vmatprep.subr.mxu0 0.0
        %1017 = vmatpush1.xpose.msra.mxu0 0.0
        %1018 = vmatprep.subr.mxu0 0.0
        %1019 = vmatpush1.xpose.msra.mxu0 0.0
        %1020 = vmatprep.subr.mxu0 0.0
        %1021 = vmatpush1.xpose.msra.mxu0 0.0
        %1022 = vmatprep.subr.mxu0 0.0
        %1023 = vmatpush1.xpose.msra.mxu0 0.0
        %1024 = vmatprep.subr.mxu0 0.0
        %1025 = vmatpush1.xpose.msra.mxu0 0.0
        %1026 = vmatprep.subr.mxu0 0.0
        %1027 = vmatpush1.xpose.msra.mxu0 0.0
        %1028 = vmatprep.subr.mxu0 0.0
        %1029 = vmatpush1.xpose.msra.mxu0 0.0
        %1030 = vmatprep.subr.mxu0 0.0
        %1031 = vmatpush1.xpose.msra.mxu0 0.0
        %1032 = vmatprep.subr.mxu0 0.0
        %1033 = vmatpush1.xpose.msra.mxu0 0.0
        %1034 = vmatprep.subr.mxu0 0.0
        %1035 = vmatpush1.xpose.msra.mxu0 0.0
        %1036 = vmatprep.subr.mxu0 0.0
        %1037 = vmatpush1.xpose.msra.mxu0 0.0
        %1038 = vmatprep.subr.mxu0 0.0
        %1039 = vmatpush1.xpose.msra.mxu0 0.0
        %1040 = vmatprep.subr.mxu0 0.0
        %1041 = vmatpush1.xpose.msra.mxu0 0.0
        %1042 = vmatprep.subr.mxu0 0.0
        %1043 = vmatpush1.xpose.msra.mxu0 0.0
        %1044 = vmatprep.subr.mxu0 0.0
        %1045 = vmatpush1.xpose.msra.mxu0 0.0
        %1046 = vmatprep.subr.mxu0 0.0
        %1047 = vmatpush1.xpose.msra.mxu0 0.0
        %1048 = vmatprep.subr.mxu0 0.0
        %1049 = vmatpush1.xpose.msra.mxu0 0.0
        %1050 = vmatprep.subr.mxu0 0.0
        %1051 = vmatpush1.xpose.msra.mxu0 0.0
        %1052 = vmatprep.subr.mxu0 0.0
        %1053 = vmatpush1.xpose.msra.mxu0 0.0
        %1054 = vmatprep.mubr.f32.mxu0 0.0
        %1055 = vmatmul.mubr.f32.gmra.mrb[0].mxu0 %v986
        %v1056 = vpop.f32.mrb[0].mxu0
        %v1057 = vadd.f32 0.0, %v1056
        %v1058 = vpop.f32.mrb[0].mxu0
        %1059 = vdwg.mxu0
        %v1060 = vsel %vm553, %v1057, -inf
        %1061 = vmax.xlane.f32.xlu0 %v1060
        %v1062 = vpop.xlane.xlu0 %1061
        %v1063 = vsub.f32 %v1057, %v1062
        %v1064 = vmul.f32 %v1063, 1.442695
        %v1065 = vpow.pop %v1064
        %v1066 = vsel %vm553, %v1065, 0.0
        %1067 = vadd.xlane.f32.xlu0 %v1066
        %v1068 = vpop.xlane.xlu0 %1067
        %v1069 = vrcp.pop %v1068
        %v1070 = vmul.f32 %v1065, %v1069
        %1071 = vrot.lane.b32.xlu0 %v473, 32
        %v1072 = vpop.permute.xlu0 %1071
        %v1075 = vsel %vm553, %v1070, 0
        %1077 = vmatprep.subr.mxu0 0.0
        %1078 = vmatpush1.msra.mxu0 %v1072
        %1079 = vmatprep.subr.mxu0 0.0
        %1080 = vmatpush1.msra.mxu0 0.0
        %1081 = vmatprep.subr.mxu0 0.0
        %1082 = vmatpush1.msra.mxu0 0.0
        %1083 = vmatprep.subr.mxu0 0.0
        %1084 = vmatpush1.msra.mxu0 0.0
        %1085 = vmatprep.subr.mxu0 0.0
        %1086 = vmatpush1.msra.mxu0 0.0
        %1087 = vmatprep.subr.mxu0 0.0
        %1088 = vmatpush1.msra.mxu0 0.0
        %1089 = vmatprep.subr.mxu0 0.0
        %1090 = vmatpush1.msra.mxu0 0.0
        %1091 = vmatprep.subr.mxu0 0.0
        %1092 = vmatpush1.msra.mxu0 0.0
        %1093 = vmatprep.subr.mxu0 0.0
        %1094 = vmatpush1.msra.mxu0 0.0
        %1095 = vmatprep.subr.mxu0 0.0
        %1096 = vmatpush1.msra.mxu0 0.0
        %1097 = vmatprep.subr.mxu0 0.0
        %1098 = vmatpush1.msra.mxu0 0.0
        %1099 = vmatprep.subr.mxu0 0.0
        %1100 = vmatpush1.msra.mxu0 0.0
        %1101 = vmatprep.subr.mxu0 0.0
        %1102 = vmatpush1.msra.mxu0 0.0
        %1103 = vmatprep.subr.mxu0 0.0
        %1104 = vmatpush1.msra.mxu0 0.0
        %1105 = vmatprep.subr.mxu0 0.0
        %1106 = vmatpush1.msra.mxu0 0.0
        %1107 = vmatprep.subr.mxu0 0.0
        %1108 = vmatpush1.msra.mxu0 0.0
        %1109 = vmatprep.subr.mxu0 0.0
        %1110 = vmatpush1.msra.mxu0 0.0
        %1111 = vmatprep.subr.mxu0 0.0
        %1112 = vmatpush1.msra.mxu0 0.0
        %1113 = vmatprep.subr.mxu0 0.0
        %1114 = vmatpush1.msra.mxu0 0.0
        %1115 = vmatprep.subr.mxu0 0.0
        %1116 = vmatpush1.msra.mxu0 0.0
        %1117 = vmatprep.subr.mxu0 0.0
        %1118 = vmatpush1.msra.mxu0 0.0
        %1119 = vmatprep.subr.mxu0 0.0
        %1120 = vmatpush1.msra.mxu0 0.0
        %1121 = vmatprep.subr.mxu0 0.0
        %1122 = vmatpush1.msra.mxu0 0.0
        %1123 = vmatprep.subr.mxu0 0.0
        %1124 = vmatpush1.msra.mxu0 0.0
        %1125 = vmatprep.subr.mxu0 0.0
        %1126 = vmatpush1.msra.mxu0 0.0
        %1127 = vmatprep.subr.mxu0 0.0
        %1128 = vmatpush1.msra.mxu0 0.0
        %1129 = vmatprep.subr.mxu0 0.0
        %1130 = vmatpush1.msra.mxu0 0.0
        %1131 = vmatprep.subr.mxu0 0.0
        %1132 = vmatpush1.msra.mxu0 0.0
        %1133 = vmatprep.subr.mxu0 0.0
        %1134 = vmatpush1.msra.mxu0 0.0
        %1135 = vmatprep.subr.mxu0 0.0
        %1136 = vmatpush1.msra.mxu0 0.0
        %1137 = vmatprep.subr.mxu0 0.0
        %1138 = vmatpush1.msra.mxu0 0.0
        %1139 = vmatprep.subr.mxu0 0.0
        %1140 = vmatpush1.msra.mxu0 0.0
        %1141 = vmatprep.mubr.f32.mxu0 0.0
        %1142 = vmatmul.mubr.f32.gmra.mrb[0].mxu0 %v1075
        %v1143 = vpop.f32.mrb[0].mxu0
        %v1144 = vadd.f32 0.0, %v1143
        %v1145 = vpop.f32.mrb[0].mxu0
        %1146 = vdwg.mxu0
        %1148 = vrot.lane.b32.xlu0 %v1144, 96
        %v1149 = vpop.permute.xlu0 %1148
        %vm1151 = vcmask 1048320
        %1152 = vst.msk [vmem:[#allocation2] sm:$0xff] %vm1151, %v1149
        %v1153 = vld [vmem:[#allocation2] sm:$0xff]
        %v1154 = vld [vmem:[#allocation8] sm:$0xff]
        %v1155 = vld [vmem:[#allocation8 + $0x8] sm:$0xff]
        %v1156 = vld [vmem:[#allocation8 + $0x10] sm:$0xff]
        %v1157 = vld [vmem:[#allocation8 + $0x18] sm:$0xff]
        %v1158 = vld [vmem:[#allocation8 + $0x20] sm:$0xff]
        %v1159 = vld [vmem:[#allocation8 + $0x28] sm:$0xff]
        %v1160 = vld [vmem:[#allocation8 + $0x30] sm:$0xff]
        %v1161 = vld [vmem:[#allocation8 + $0x38] sm:$0xff]
        %v1162 = vld [vmem:[#allocation8 + $0x40] sm:$0xff]
        %v1163 = vld [vmem:[#allocation8 + $0x48] sm:$0xff]
        %v1164 = vld [vmem:[#allocation8 + $0x50] sm:$0xff]
        %v1165 = vld [vmem:[#allocation8 + $0x58] sm:$0xff]
        %v1166 = vld [vmem:[#allocation8 + $0x60] sm:$0xff]
        %v1167 = vld [vmem:[#allocation8 + $0x68] sm:$0xff]
        %v1168 = vld [vmem:[#allocation8 + $0x70] sm:$0xff]
        %v1169 = vld [vmem:[#allocation8 + $0x78] sm:$0xff]
        %v1170 = vld [vmem:[%s4] sm:$0x1]
        %v1172 = vlaneseq
        %v1173 = vshrl.u32 %v1172, 7
        %v1174 = vsub.s32 0, %v1173
        %v1175 = vrot.slane %v1170, %v1174
        %1177 = vmatprep.subr.mxu0 0.0
        %1178 = vmatpush1.msra.mxu0 %v1154
        %1179 = vmatprep.subr.mxu0 0.0
        %1180 = vmatpush1.msra.mxu0 %v1155
        %1181 = vmatprep.subr.mxu0 0.0
        %1182 = vmatpush1.msra.mxu0 %v1156
        %1183 = vmatprep.subr.mxu0 0.0
        %1184 = vmatpush1.msra.mxu0 %v1157
        %1185 = vmatprep.subr.mxu0 0.0
        %1186 = vmatpush1.msra.mxu0 %v1158
        %1187 = vmatprep.subr.mxu0 0.0
        %1188 = vmatpush1.msra.mxu0 %v1159
        %1189 = vmatprep.subr.mxu0 0.0
        %1190 = vmatpush1.msra.mxu0 %v1160
        %1191 = vmatprep.subr.mxu0 0.0
        %1192 = vmatpush1.msra.mxu0 %v1161
        %1193 = vmatprep.subr.mxu0 0.0
        %1194 = vmatpush1.msra.mxu0 %v1162
        %1195 = vmatprep.subr.mxu0 0.0
        %1196 = vmatpush1.msra.mxu0 %v1163
        %1197 = vmatprep.subr.mxu0 0.0
        %1198 = vmatpush1.msra.mxu0 %v1164
        %1199 = vmatprep.subr.mxu0 0.0
        %1200 = vmatpush1.msra.mxu0 %v1165
        %1201 = vmatprep.subr.mxu0 0.0
        %1202 = vmatpush1.msra.mxu0 %v1166
        %1203 = vmatprep.subr.mxu0 0.0
        %1204 = vmatpush1.msra.mxu0 %v1167
        %1205 = vmatprep.subr.mxu0 0.0
        %1206 = vmatpush1.msra.mxu0 %v1168
        %1207 = vmatprep.subr.mxu0 0.0
        %1208 = vmatpush1.msra.mxu0 %v1169
        %1209 = vmatprep.subr.mxu0 0.0
        %1210 = vmatpush1.msra.mxu0 0.0
        %1211 = vmatprep.subr.mxu0 0.0
        %1212 = vmatpush1.msra.mxu0 0.0
        %1213 = vmatprep.subr.mxu0 0.0
        %1214 = vmatpush1.msra.mxu0 0.0
        %1215 = vmatprep.subr.mxu0 0.0
        %1216 = vmatpush1.msra.mxu0 0.0
        %1217 = vmatprep.subr.mxu0 0.0
        %1218 = vmatpush1.msra.mxu0 0.0
        %1219 = vmatprep.subr.mxu0 0.0
        %1220 = vmatpush1.msra.mxu0 0.0
        %1221 = vmatprep.subr.mxu0 0.0
        %1222 = vmatpush1.msra.mxu0 0.0
        %1223 = vmatprep.subr.mxu0 0.0
        %1224 = vmatpush1.msra.mxu0 0.0
        %1225 = vmatprep.subr.mxu0 0.0
        %1226 = vmatpush1.msra.mxu0 0.0
        %1227 = vmatprep.subr.mxu0 0.0
        %1228 = vmatpush1.msra.mxu0 0.0
        %1229 = vmatprep.subr.mxu0 0.0
        %1230 = vmatpush1.msra.mxu0 0.0
        %1231 = vmatprep.subr.mxu0 0.0
        %1232 = vmatpush1.msra.mxu0 0.0
        %1233 = vmatprep.subr.mxu0 0.0
        %1234 = vmatpush1.msra.mxu0 0.0
        %1235 = vmatprep.subr.mxu0 0.0
        %1236 = vmatpush1.msra.mxu0 0.0
        %1237 = vmatprep.subr.mxu0 0.0
        %1238 = vmatpush1.msra.mxu0 0.0
        %1239 = vmatprep.subr.mxu0 0.0
        %1240 = vmatpush1.msra.mxu0 0.0
        %1241 = vmatprep.mubr.f32.mxu0 0.0
        %1242 = vmatmul.mubr.f32.gmra.mrb[0].mxu0 %v1153
        %v1243 = vpop.f32.mrb[0].mxu0
        %v1244 = vadd.f32 %v1175, %v1243
        %v1245 = vpop.f32.mrb[0].mxu0
        %1246 = vdwg.mxu0
        %1247 = vst [vmem:[%s268] sm:$0xff] %v1244
        %s1248 = sand.u32 %s141, 1
        %s1249 = scalar_lea.sflag [#allocation5], %s1248
        %s1250 = sand.u32 %s141, 1
        %s1251 = smul.addr %s1250, 8
        %s1252 = scalar_lea.vmem [#allocation9], %s1251
        // Predicated region
        $region53: #{tpu_custom_call.1} parent=39 // pred_check
          %p1253 = pneg %p151
        $region54: #{tpu_custom_call.1} parent=39 // pred_check_branch
          %1255 = sbr.rel (%p1253) target = $region56
        $region55: #{tpu_custom_call.1} parent=39 // pred_region
          %s1257 = ssub.s32 128, 128
          %1258 = vsyncadd %s1249, %s1257
          %s1259 = smul.addr %s23, 128
          %s1260 = scalar_lea.hbm %s5, %s1259
          %s1262 = sshll.u32 %s1252, 4
          %s1263 = int_to_ptr.vmem [resolvable:$true] %s1262
          %1265 = dma.vmem_to_hbm [thread:$0]  %s1263, 128, %s1260, %s1249
        $region56: #{tpu_custom_call.1} parent=39 // pred_fallthru
          _
      $region40: #{tpu_custom_call.1} parent=5 // pred_fallthru
        _
      %p1266 = scmp.le.s32.totalorder 2, %s18
      // Predicated region
      $region57: #{tpu_custom_call.1} parent=5 // pred_check
        %p1267 = pneg %p1266
      $region58: #{tpu_custom_call.1} parent=5 // pred_check_branch
        %1269 = sbr.rel (%p1267) target = $region60
      $region59: #{tpu_custom_call.1} parent=5 // pred_region
        %s1270 = ssub.s32 %s18, 2
        // Predicated region
        $region61: #{tpu_custom_call.1} parent=59 // pred_check
          %p1271 = pneg %p157
        $region62: #{tpu_custom_call.1} parent=59 // pred_check_branch
          %1273 = sbr.rel (%p1271) target = $region64
        $region63: #{tpu_custom_call.1} parent=59 // pred_region
          %s1274 = sand.u32 %s142, 1
          %s1275 = scalar_lea.sflag [#allocation5], %s1274
          %s1276 = sand.u32 %s142, 1
          %s1277 = smul.addr %s1276, 8
          %s1278 = scalar_lea.vmem [#allocation9], %s1277
          %1279 = dma.done %s1275, 128
        $region64: #{tpu_custom_call.1} parent=59 // pred_fallthru
          _
      $region60: #{tpu_custom_call.1} parent=5 // pred_fallthru
        _
    $region6: #{tpu_custom_call.1} parent=1 // loop_footer
      %s22 = sadd.s32 1, %s18
    $region7: #{tpu_custom_call.1} parent=1 // loop_footer_branch
      %17 = sbr.rel target = $region3
    $region8: #{tpu_custom_call.1} parent=1 // loop_exit
      _
    %1280 = vsyncpa [#allocation4], 1
    %s1281 = scalar_lea.sflag [#allocation4], 1
    %1282 = vsyncpa %s1281, 1
    %1283 = vsyncpa [#allocation7], 1
    %1284 = vsyncpa [#allocation5], 1
    %s1285 = scalar_lea.sflag [#allocation5], 1
    %1286 = vsyncpa %s1285, 1

</llo_original>
